<compile_context>
chip_gen: v5e
topology: v5e:2x2
jax: 0.10.0
libtpu: 0.0.40
codegen_flags: <defaults>
</compile_context>

<pallas_src>
import functools

import jax
import jax.numpy as jnp
from jax import lax
from jax.experimental import pallas as pl
from jax.experimental.pallas import tpu as pltpu


def convlstm_kernel(xconv_ref, wht_ref, wci_ref, wcf_ref, wco_ref, mask_ref,
                    out_ref, hpad_sc, c_sc, im2col_sc, gates_sc,
                    *, K, pad, Cout, H, W, align, t_blk):
    """One T-block of the recurrence for one batch element.

    Layout: channels on sublanes, flattened spatial (y*W + x) on lanes.
      xconv_ref : (t_blk, 4*Cout, H*W)   precomputed x-conv + bias, per step
      wht_ref   : (4*Cout, K*K*Cout)     recurrent conv weights (gate-major rows)
      wci/wcf/wco_ref : (Cout, H*W)      peephole weights
      mask_ref  : (K, H*W)               per-dx SOURCE-column validity masks
      out_ref   : (t_blk, Cout, H*W)     hidden states for this (b, t-block)
      hpad_sc   : (K, Cout, align+H*W+align) per-dx pre-masked zero-padded h_{t-1}
      c_sc      : (Cout, H*W)            cell state carry
      im2col_sc : (K*K*Cout, H*W)        transposed im2col staging (VMEM, not vregs)
      gates_sc  : (4*Cout, H*W)          recurrent-matmul result staging
    """
    HW = H * W
    tb = pl.program_id(1)

    # Reset recurrent state once per sequence (halo zeroed once).
    # NOTE: correctness of the VMEM h/c carry relies on the grid iterating
    # b-major with the t-block axis innermost (last grid axis fastest) and on
    # this tb==0 reset; do not mark the t-block axis "parallel" or reorder.
    @pl.when(tb == 0)
    def _():
        hpad_sc[...] = jnp.zeros_like(hpad_sc)
        c_sc[...] = jnp.zeros_like(c_sc)

    def step(t, carry):
        del carry
        # ---- transposed im2col of h_{t-1}, staged straight into VMEM ----
        # Tap (dy, dx) is a static lane-offset slice of the dx-th pre-masked
        # padded h plane: the width (dx) wrap is handled by the source-column
        # mask baked into hpad_sc[dx], the height (dy) wrap by the zero halo.
        for dy in range(K):
            for dx in range(K):
                start = align + (dy - pad) * W + (dx - pad)
                tap = dy * K + dx
                im2col_sc[tap * Cout:(tap + 1) * Cout, :] = \
                    hpad_sc[dx, :, start:start + HW]

        # ---- one fused MXU matmul for the whole recurrent convolution ----
        # (f32 operands on purpose; bf16 needs the 1e-3 check re-validated.)
        gates_sc[...] = jnp.dot(wht_ref[...], im2col_sc[...],
                                preferred_element_type=jnp.float32)

        # ---- gate math on (Cout, H*W) = 8-vreg slices only ----
        c_prev = c_sc[...]
        i_pre = gates_sc[0 * Cout:1 * Cout, :] + xconv_ref[t, 0 * Cout:1 * Cout, :]
        f_pre = gates_sc[1 * Cout:2 * Cout, :] + xconv_ref[t, 1 * Cout:2 * Cout, :]
        g_pre = gates_sc[2 * Cout:3 * Cout, :] + xconv_ref[t, 2 * Cout:3 * Cout, :]
        o_pre = gates_sc[3 * Cout:4 * Cout, :] + xconv_ref[t, 3 * Cout:4 * Cout, :]

        i_g = jax.nn.sigmoid(i_pre + wci_ref[...] * c_prev)
        f_g = jax.nn.sigmoid(f_pre + wcf_ref[...] * c_prev)
        c_new = f_g * c_prev + i_g * jnp.tanh(g_pre)
        o_g = jax.nn.sigmoid(o_pre + wco_ref[...] * c_new)
        h_new = o_g * jnp.tanh(c_new)

        c_sc[...] = c_new
        # Refresh the interiors of the K pre-masked padded h planes; only the
        # K-1 off-center dx values need a mask multiply (halos stay zero).
        for dx in range(K):
            hm = h_new if dx == pad else h_new * mask_ref[dx:dx + 1, :]
            hpad_sc[dx, :, align:align + HW] = hm

        out_ref[t] = h_new                       # lane-dense (Cout, H*W) store
        return 0

    lax.fori_loop(0, t_blk, step, 0)


def conv_lstm_forward(x, w_oihw, bias, wci_chw, wcf_chw, wco_chw, *, K, pad,
                      t_blk=8):
    """x: (B, Cin, T, H, W) f32 (PyTorch layout). Returns (B, Cout, T, H, W)."""
    B, Cin, T, H, W = x.shape
    Cout = wci_chw.shape[0]
    HW = H * W
    ALIGN = 128  # 128-lane-aligned interior of the flat padded h buffers
    assert pad * W + pad <= ALIGN, "spatial shift exceeds padded-buffer halo"

    t_blk = min(t_blk, T)
    while T % t_blk:
        t_blk -= 1
    n_tb = T // t_blk

    # ---- hoist the x-side convolution (+ bias) out of the recurrence ----
    # Perf note: at larger shapes drop HIGHEST (DEFAULT / bf16-in, f32-acc);
    # kept HIGHEST here so the strict 1e-3 self-check against the HIGHEST
    # reference is not at the mercy of the bf16 single-pass tail error.
    w_x_hwio = jnp.transpose(w_oihw[:, :Cin], (2, 3, 1, 0))          # (K,K,Cin,4Cout)
    x_nhwc = jnp.transpose(x, (0, 2, 3, 4, 1)).reshape(B * T, H, W, Cin)
    xconv = lax.conv_general_dilated(
        x_nhwc, w_x_hwio, (1, 1), [(pad, pad), (pad, pad)],
        dimension_numbers=("NHWC", "HWIO", "NHWC"),
        precision=lax.Precision.HIGHEST) + bias[None, None, None, :]
    # lane-dense, gate-major layout: (B, T, 4*Cout, H*W)
    xconv_t = jnp.transpose(xconv.reshape(B, T, H, W, 4 * Cout),
                            (0, 1, 4, 2, 3)).reshape(B, T, 4 * Cout, HW)

    # recurrent (h-side) weights: rows = out-channel, cols = (dy, dx, c_h)
    wh_t = jnp.transpose(w_oihw[:, Cin:], (0, 2, 3, 1)).reshape(4 * Cout, K * K * Cout)

    # peephole weights, flattened spatial on lanes
    wci = wci_chw.reshape(Cout, HW)
    wcf = wcf_chw.reshape(Cout, HW)
    wco = wco_chw.reshape(Cout, HW)

    # Per-dx SOURCE-column masks: zeroing these columns of h before slicing it
    # at lane offset (dx - pad) reproduces exactly the width-validity masking
    # of the shifted tap (row wraps land in the zero halo automatically).
    xs = jnp.arange(HW) % W
    rows = []
    for dx in range(K):
        if dx < pad:
            keep = xs < W - (pad - dx)
        elif dx > pad:
            keep = xs >= (dx - pad)
        else:
            keep = jnp.ones((HW,), jnp.bool_)
        rows.append(keep.astype(jnp.float32))
    masks = jnp.stack(rows, axis=0)                                   # (K, H*W)

    kernel = functools.partial(convlstm_kernel, K=K, pad=pad, Cout=Cout,
                               H=H, W=W, align=ALIGN, t_blk=t_blk)

    out = pl.pallas_call(
        kernel,
        out_shape=jax.ShapeDtypeStruct((B, T, Cout, HW), jnp.float32),
        grid_spec=pltpu.PrefetchScalarGridSpec(
            num_scalar_prefetch=0,
            grid=(B, n_tb),
            in_specs=[
                pl.BlockSpec((pl.Squeezed(), t_blk, 4 * Cout, HW),
                             lambda b, tb: (b, tb, 0, 0)),
                # Invariant operands: constant index_map -> fetched once and
                # reused across the (tiny) grid; extra buffering not needed.
                pl.BlockSpec((4 * Cout, K * K * Cout), lambda b, tb: (0, 0)),
                pl.BlockSpec((Cout, HW), lambda b, tb: (0, 0)),
                pl.BlockSpec((Cout, HW), lambda b, tb: (0, 0)),
                pl.BlockSpec((Cout, HW), lambda b, tb: (0, 0)),
                pl.BlockSpec((K, HW), lambda b, tb: (0, 0)),
            ],
            out_specs=pl.BlockSpec((pl.Squeezed(), t_blk, Cout, HW),
                                   lambda b, tb: (b, tb, 0, 0)),
            scratch_shapes=[
                pltpu.VMEM((K, Cout, ALIGN + HW + ALIGN), jnp.float32),  # pre-masked padded h, per dx
                pltpu.VMEM((Cout, HW), jnp.float32),                     # cell state
                pltpu.VMEM((K * K * Cout, HW), jnp.float32),             # transposed im2col
                pltpu.VMEM((4 * Cout, HW), jnp.float32),                 # recurrent gates
            ],
        ),
        # B is independent (usable by v7x's 2 TensorCores; no-op on 1-TC
        # v5e/v6e); the t-block axis carries state and must stay sequential.
        compiler_params=pltpu.CompilerParams(
            dimension_semantics=("parallel", "arbitrary")),
    )(xconv_t, wh_t, wci, wcf, wco, masks)

    out = out.reshape(B, T, Cout, H, W)
    return jnp.transpose(out, (0, 2, 1, 3, 4))                        # (B, Cout, T, H, W)


def ref_forward(x, w_oihw, bias, wci_chw, wcf_chw, wco_chw, *, pad):
    """Pure-JAX reference matching the PyTorch module semantics (NCHW)."""
    B, Cin, T, H, W = x.shape
    Cout = wci_chw.shape[0]
    h = jnp.zeros((B, Cout, H, W), jnp.float32)
    c = jnp.zeros((B, Cout, H, W), jnp.float32)
    outs = []
    for t in range(T):
        xh = jnp.concatenate([x[:, :, t], h], axis=1)
        conv = lax.conv_general_dilated(
            xh, w_oihw, (1, 1), [(pad, pad), (pad, pad)],
            dimension_numbers=("NCHW", "OIHW", "NCHW"),
            precision=lax.Precision.HIGHEST) + bias[None, :, None, None]
        i_c, f_c, c_c, o_c = jnp.split(conv, 4, axis=1)
        ig = jax.nn.sigmoid(i_c + wci_chw[None] * c)
        fg = jax.nn.sigmoid(f_c + wcf_chw[None] * c)
        c = fg * c + ig * jnp.tanh(c_c)
        og = jax.nn.sigmoid(o_c + wco_chw[None] * c)
        h = og * jnp.tanh(c)
        outs.append(h)
    return jnp.stack(outs, axis=2)


if __name__ == "__main__":
    # Small shapes consistent with the module's forward.
    B, Cin, T, H, W = 2, 4, 8, 16, 16
    Cout, K, pad = 32, 3, 1     # kernel_size=(3,3), padding=1, activation="tanh"
    # TODO(synk): ffc / attention variants of ConvLSTMCell are not implemented
    # (defaults ffc=False, attention=False).

    key = jax.random.PRNGKey(0)
    kx, kw, kb, k1, k2, k3 = jax.random.split(key, 6)

    x = jax.random.normal(kx, (B, Cin, T, H, W), jnp.float32)

    # Deterministic synthetic parameters in PyTorch shapes, scaled small.
    w_oihw = jax.random.normal(kw, (4 * Cout, Cin + Cout, K, K), jnp.float32) * 0.1
    bias = jax.random.normal(kb, (4 * Cout,), jnp.float32) * 0.1
    wci_chw = jax.random.normal(k1, (Cout, H, W), jnp.float32) * 0.1
    wcf_chw = jax.random.normal(k2, (Cout, H, W), jnp.float32) * 0.1
    wco_chw = jax.random.normal(k3, (Cout, H, W), jnp.float32) * 0.1

    out = conv_lstm_forward(x, w_oihw, bias, wci_chw, wcf_chw, wco_chw, K=K, pad=pad)
    out = jax.block_until_ready(out)

    ref = ref_forward(x, w_oihw, bias, wci_chw, wcf_chw, wco_chw, pad=pad)
    assert out.shape == (B, Cout, T, H, W)
    assert jnp.allclose(out, ref, rtol=1e-3, atol=1e-3), \
        f"max abs err {jnp.max(jnp.abs(out - ref))}"

    print("KERNEL_OK")
</pallas_src>

<mosaic_0001>
module attributes {stable_mosaic.version = 11 : i64} {
  func.func @convlstm_kernel(%arg0: i32, %arg1: i32, %arg2: memref<1x8x128x256xf32, #tpu.memory_space<vmem>>, %arg3: memref<128x288xf32, #tpu.memory_space<vmem>>, %arg4: memref<32x256xf32, #tpu.memory_space<vmem>>, %arg5: memref<32x256xf32, #tpu.memory_space<vmem>>, %arg6: memref<32x256xf32, #tpu.memory_space<vmem>>, %arg7: memref<3x256xf32, #tpu.memory_space<vmem>>, %arg8: memref<1x8x32x256xf32, #tpu.memory_space<vmem>>, %arg9: memref<3x32x512xf32, #tpu.memory_space<vmem>>, %arg10: memref<32x256xf32, #tpu.memory_space<vmem>>, %arg11: memref<288x256xf32, #tpu.memory_space<vmem>>, %arg12: memref<128x256xf32, #tpu.memory_space<vmem>>) attributes {dimension_semantics = [#tpu.dimension_semantics<parallel>, #tpu.dimension_semantics<arbitrary>], iteration_bounds = array<i64: 2, 1>, scalar_prefetch = 0 : i64, scratch_operands = 4 : i64, tpu.core_type = #tpu.core_type<tc>, window_params = [{transform_indices = @transform_0, window_bounds = array<i64: 1, 8, 128, 256>}, {pipeline_mode = #tpu.pipeline_mode<synchronous>, transform_indices = @transform_1, window_bounds = array<i64: 128, 288>}, {pipeline_mode = #tpu.pipeline_mode<synchronous>, transform_indices = @transform_2, window_bounds = array<i64: 32, 256>}, {pipeline_mode = #tpu.pipeline_mode<synchronous>, transform_indices = @transform_3, window_bounds = array<i64: 32, 256>}, {pipeline_mode = #tpu.pipeline_mode<synchronous>, transform_indices = @transform_4, window_bounds = array<i64: 32, 256>}, {pipeline_mode = #tpu.pipeline_mode<synchronous>, transform_indices = @transform_5, window_bounds = array<i64: 3, 256>}, {transform_indices = @transform_6, window_bounds = array<i64: 1, 8, 32, 256>}]} {
    %c0_i32 = arith.constant 0 : i32
    %0 = arith.cmpi eq, %arg1, %c0_i32 : i32
    %1 = arith.extui %0 : i1 to i32
    %c0_i32_0 = arith.constant 0 : i32
    %2 = arith.cmpi ne, %1, %c0_i32_0 : i32
    scf.if %2 {
      %cst = arith.constant 0.000000e+00 : f32
      %4 = vector.broadcast %cst : f32 to vector<3x32x512xf32>
      %c0 = arith.constant 0 : index
      %c0_3 = arith.constant 0 : index
      %c0_4 = arith.constant 0 : index
      %5 = vector.load %arg9[%c0, %c0_3, %c0_4] : memref<3x32x512xf32, #tpu.memory_space<vmem>>, vector<3x32x512xf32>
      tpu.vector_store %arg9[%c0, %c0_3, %c0_4], %4 {strides = array<i32>} : memref<3x32x512xf32, #tpu.memory_space<vmem>>, vector<3x32x512xf32>,
      %cst_5 = arith.constant 0.000000e+00 : f32
      %6 = vector.broadcast %cst_5 : f32 to vector<32x256xf32>
      %c0_6 = arith.constant 0 : index
      %c0_7 = arith.constant 0 : index
      %7 = vector.load %arg10[%c0_6, %c0_7] : memref<32x256xf32, #tpu.memory_space<vmem>>, vector<32x256xf32>
      tpu.vector_store %arg10[%c0_6, %c0_7], %6 {strides = array<i32>} : memref<32x256xf32, #tpu.memory_space<vmem>>, vector<32x256xf32>,
    } else {
    }
    %c0_i32_1 = arith.constant 0 : i32
    %c8_i32 = arith.constant 8 : i32
    %3 = arith.addi %c0_i32_1, %c8_i32 : i32
    %c1_i32 = arith.constant 1 : i32
    scf.for %arg13 = %c0_i32_1 to %3 step %c1_i32  : i32 {
      %c0 = arith.constant 0 : index
      %c0_3 = arith.constant 0 : index
      %c111 = arith.constant 111 : index
      %4 = vector.load %arg9[%c0, %c0_3, %c111] : memref<3x32x512xf32, #tpu.memory_space<vmem>>, vector<1x32x256xf32>
      %5 = vector.shape_cast %4 : vector<1x32x256xf32> to vector<32x256xf32>
      %c0_4 = arith.constant 0 : index
      %c0_5 = arith.constant 0 : index
      %6 = vector.load %arg11[%c0_4, %c0_5] : memref<288x256xf32, #tpu.memory_space<vmem>>, vector<32x256xf32>
      tpu.vector_store %arg11[%c0_4, %c0_5], %5 {strides = array<i32>} : memref<288x256xf32, #tpu.memory_space<vmem>>, vector<32x256xf32>,
      %c1 = arith.constant 1 : index
      %c0_6 = arith.constant 0 : index
      %c112 = arith.constant 112 : index
      %7 = vector.load %arg9[%c1, %c0_6, %c112] : memref<3x32x512xf32, #tpu.memory_space<vmem>>, vector<1x32x256xf32>
      %8 = vector.shape_cast %7 : vector<1x32x256xf32> to vector<32x256xf32>
      %c32 = arith.constant 32 : index
      %c0_7 = arith.constant 0 : index
      %9 = vector.load %arg11[%c32, %c0_7] : memref<288x256xf32, #tpu.memory_space<vmem>>, vector<32x256xf32>
      tpu.vector_store %arg11[%c32, %c0_7], %8 {strides = array<i32>} : memref<288x256xf32, #tpu.memory_space<vmem>>, vector<32x256xf32>,
      %c2 = arith.constant 2 : index
      %c0_8 = arith.constant 0 : index
      %c113 = arith.constant 113 : index
      %10 = vector.load %arg9[%c2, %c0_8, %c113] : memref<3x32x512xf32, #tpu.memory_space<vmem>>, vector<1x32x256xf32>
      %11 = vector.shape_cast %10 : vector<1x32x256xf32> to vector<32x256xf32>
      %c64 = arith.constant 64 : index
      %c0_9 = arith.constant 0 : index
      %12 = vector.load %arg11[%c64, %c0_9] : memref<288x256xf32, #tpu.memory_space<vmem>>, vector<32x256xf32>
      tpu.vector_store %arg11[%c64, %c0_9], %11 {strides = array<i32>} : memref<288x256xf32, #tpu.memory_space<vmem>>, vector<32x256xf32>,
      %c0_10 = arith.constant 0 : index
      %c0_11 = arith.constant 0 : index
      %c127 = arith.constant 127 : index
      %13 = vector.load %arg9[%c0_10, %c0_11, %c127] : memref<3x32x512xf32, #tpu.memory_space<vmem>>, vector<1x32x256xf32>
      %14 = vector.shape_cast %13 : vector<1x32x256xf32> to vector<32x256xf32>
      %c96 = arith.constant 96 : index
      %c0_12 = arith.constant 0 : index
      %15 = vector.load %arg11[%c96, %c0_12] : memref<288x256xf32, #tpu.memory_space<vmem>>, vector<32x256xf32>
      tpu.vector_store %arg11[%c96, %c0_12], %14 {strides = array<i32>} : memref<288x256xf32, #tpu.memory_space<vmem>>, vector<32x256xf32>,
      %c1_13 = arith.constant 1 : index
      %c0_14 = arith.constant 0 : index
      %c128 = arith.constant 128 : index
      %16 = vector.load %arg9[%c1_13, %c0_14, %c128] : memref<3x32x512xf32, #tpu.memory_space<vmem>>, vector<1x32x256xf32>
      %17 = vector.shape_cast %16 : vector<1x32x256xf32> to vector<32x256xf32>
      %c128_15 = arith.constant 128 : index
      %c0_16 = arith.constant 0 : index
      %18 = vector.load %arg11[%c128_15, %c0_16] : memref<288x256xf32, #tpu.memory_space<vmem>>, vector<32x256xf32>
      tpu.vector_store %arg11[%c128_15, %c0_16], %17 {strides = array<i32>} : memref<288x256xf32, #tpu.memory_space<vmem>>, vector<32x256xf32>,
      %c2_17 = arith.constant 2 : index
      %c0_18 = arith.constant 0 : index
      %c129 = arith.constant 129 : index
      %19 = vector.load %arg9[%c2_17, %c0_18, %c129] : memref<3x32x512xf32, #tpu.memory_space<vmem>>, vector<1x32x256xf32>
      %20 = vector.shape_cast %19 : vector<1x32x256xf32> to vector<32x256xf32>
      %c160 = arith.constant 160 : index
      %c0_19 = arith.constant 0 : index
      %21 = vector.load %arg11[%c160, %c0_19] : memref<288x256xf32, #tpu.memory_space<vmem>>, vector<32x256xf32>
      tpu.vector_store %arg11[%c160, %c0_19], %20 {strides = array<i32>} : memref<288x256xf32, #tpu.memory_space<vmem>>, vector<32x256xf32>,
      %c0_20 = arith.constant 0 : index
      %c0_21 = arith.constant 0 : index
      %c143 = arith.constant 143 : index
      %22 = vector.load %arg9[%c0_20, %c0_21, %c143] : memref<3x32x512xf32, #tpu.memory_space<vmem>>, vector<1x32x256xf32>
      %23 = vector.shape_cast %22 : vector<1x32x256xf32> to vector<32x256xf32>
      %c192 = arith.constant 192 : index
      %c0_22 = arith.constant 0 : index
      %24 = vector.load %arg11[%c192, %c0_22] : memref<288x256xf32, #tpu.memory_space<vmem>>, vector<32x256xf32>
      tpu.vector_store %arg11[%c192, %c0_22], %23 {strides = array<i32>} : memref<288x256xf32, #tpu.memory_space<vmem>>, vector<32x256xf32>,
      %c1_23 = arith.constant 1 : index
      %c0_24 = arith.constant 0 : index
      %c144 = arith.constant 144 : index
      %25 = vector.load %arg9[%c1_23, %c0_24, %c144] : memref<3x32x512xf32, #tpu.memory_space<vmem>>, vector<1x32x256xf32>
      %26 = vector.shape_cast %25 : vector<1x32x256xf32> to vector<32x256xf32>
      %c224 = arith.constant 224 : index
      %c0_25 = arith.constant 0 : index
      %27 = vector.load %arg11[%c224, %c0_25] : memref<288x256xf32, #tpu.memory_space<vmem>>, vector<32x256xf32>
      tpu.vector_store %arg11[%c224, %c0_25], %26 {strides = array<i32>} : memref<288x256xf32, #tpu.memory_space<vmem>>, vector<32x256xf32>,
      %c2_26 = arith.constant 2 : index
      %c0_27 = arith.constant 0 : index
      %c145 = arith.constant 145 : index
      %28 = vector.load %arg9[%c2_26, %c0_27, %c145] : memref<3x32x512xf32, #tpu.memory_space<vmem>>, vector<1x32x256xf32>
      %29 = vector.shape_cast %28 : vector<1x32x256xf32> to vector<32x256xf32>
      %c256 = arith.constant 256 : index
      %c0_28 = arith.constant 0 : index
      %30 = vector.load %arg11[%c256, %c0_28] : memref<288x256xf32, #tpu.memory_space<vmem>>, vector<32x256xf32>
      tpu.vector_store %arg11[%c256, %c0_28], %29 {strides = array<i32>} : memref<288x256xf32, #tpu.memory_space<vmem>>, vector<32x256xf32>,
      %c0_29 = arith.constant 0 : index
      %c0_30 = arith.constant 0 : index
      %31 = vector.load %arg3[%c0_29, %c0_30] : memref<128x288xf32, #tpu.memory_space<vmem>>, vector<128x288xf32>
      %c0_31 = arith.constant 0 : index
      %c0_32 = arith.constant 0 : index
      %32 = vector.load %arg11[%c0_31, %c0_32] : memref<288x256xf32, #tpu.memory_space<vmem>>, vector<288x256xf32>
      %cst = arith.constant dense<0.000000e+00> : vector<128x256xf32>
      %33 = tpu.matmul %31, %32, %cst {dimension_numbers = #tpu.dot_dimension_numbers<[1], [0], [0], [1], [0, 0, 1, 1], [], []>} : vector<128x288xf32>, vector<288x256xf32>, vector<128x256xf32> -> vector<128x256xf32>
      %c0_33 = arith.constant 0 : index
      %c0_34 = arith.constant 0 : index
      %34 = vector.load %arg12[%c0_33, %c0_34] : memref<128x256xf32, #tpu.memory_space<vmem>>, vector<128x256xf32>
      tpu.vector_store %arg12[%c0_33, %c0_34], %33 {strides = array<i32>} : memref<128x256xf32, #tpu.memory_space<vmem>>, vector<128x256xf32>,
      %c0_35 = arith.constant 0 : index
      %c0_36 = arith.constant 0 : index
      %35 = vector.load %arg10[%c0_35, %c0_36] : memref<32x256xf32, #tpu.memory_space<vmem>>, vector<32x256xf32>
      %c0_37 = arith.constant 0 : index
      %c0_38 = arith.constant 0 : index
      %36 = vector.load %arg12[%c0_37, %c0_38] : memref<128x256xf32, #tpu.memory_space<vmem>>, vector<32x256xf32>
      %c0_39 = arith.constant 0 : index
      %37 = arith.index_cast %arg13 : i32 to index
      %c0_40 = arith.constant 0 : index
      %c0_41 = arith.constant 0 : index
      %38 = vector.load %arg2[%c0_39, %37, %c0_40, %c0_41] : memref<1x8x128x256xf32, #tpu.memory_space<vmem>>, vector<1x1x32x256xf32>
      %39 = vector.shape_cast %38 : vector<1x1x32x256xf32> to vector<32x256xf32>
      %40 = arith.addf %36, %39 : vector<32x256xf32>
      %c32_42 = arith.constant 32 : index
      %c0_43 = arith.constant 0 : index
      %41 = vector.load %arg12[%c32_42, %c0_43] : memref<128x256xf32, #tpu.memory_space<vmem>>, vector<32x256xf32>
      %c0_44 = arith.constant 0 : index
      %42 = arith.index_cast %arg13 : i32 to index
      %c32_45 = arith.constant 32 : index
      %c0_46 = arith.constant 0 : index
      %43 = vector.load %arg2[%c0_44, %42, %c32_45, %c0_46] : memref<1x8x128x256xf32, #tpu.memory_space<vmem>>, vector<1x1x32x256xf32>
      %44 = vector.shape_cast %43 : vector<1x1x32x256xf32> to vector<32x256xf32>
      %45 = arith.addf %41, %44 : vector<32x256xf32>
      %c64_47 = arith.constant 64 : index
      %c0_48 = arith.constant 0 : index
      %46 = vector.load %arg12[%c64_47, %c0_48] : memref<128x256xf32, #tpu.memory_space<vmem>>, vector<32x256xf32>
      %c0_49 = arith.constant 0 : index
      %47 = arith.index_cast %arg13 : i32 to index
      %c64_50 = arith.constant 64 : index
      %c0_51 = arith.constant 0 : index
      %48 = vector.load %arg2[%c0_49, %47, %c64_50, %c0_51] : memref<1x8x128x256xf32, #tpu.memory_space<vmem>>, vector<1x1x32x256xf32>
      %49 = vector.shape_cast %48 : vector<1x1x32x256xf32> to vector<32x256xf32>
      %50 = arith.addf %46, %49 : vector<32x256xf32>
      %c96_52 = arith.constant 96 : index
      %c0_53 = arith.constant 0 : index
      %51 = vector.load %arg12[%c96_52, %c0_53] : memref<128x256xf32, #tpu.memory_space<vmem>>, vector<32x256xf32>
      %c0_54 = arith.constant 0 : index
      %52 = arith.index_cast %arg13 : i32 to index
      %c96_55 = arith.constant 96 : index
      %c0_56 = arith.constant 0 : index
      %53 = vector.load %arg2[%c0_54, %52, %c96_55, %c0_56] : memref<1x8x128x256xf32, #tpu.memory_space<vmem>>, vector<1x1x32x256xf32>
      %54 = vector.shape_cast %53 : vector<1x1x32x256xf32> to vector<32x256xf32>
      %55 = arith.addf %51, %54 : vector<32x256xf32>
      %c0_57 = arith.constant 0 : index
      %c0_58 = arith.constant 0 : index
      %56 = vector.load %arg4[%c0_57, %c0_58] : memref<32x256xf32, #tpu.memory_space<vmem>>, vector<32x256xf32>
      %57 = arith.mulf %56, %35 : vector<32x256xf32>
      %58 = arith.addf %40, %57 : vector<32x256xf32>
      %59 = arith.negf %58 : vector<32x256xf32>
      %60 = math.exp %59 : vector<32x256xf32>
      %cst_59 = arith.constant 1.000000e+00 : f32
      %61 = vector.broadcast %cst_59 : f32 to vector<32x256xf32>
      %62 = arith.addf %61, %60 : vector<32x256xf32>
      %63 = arith.divf %61, %62 : vector<32x256xf32>
      %c0_60 = arith.constant 0 : index
      %c0_61 = arith.constant 0 : index
      %64 = vector.load %arg5[%c0_60, %c0_61] : memref<32x256xf32, #tpu.memory_space<vmem>>, vector<32x256xf32>
      %65 = arith.mulf %64, %35 : vector<32x256xf32>
      %66 = arith.addf %45, %65 : vector<32x256xf32>
      %67 = arith.negf %66 : vector<32x256xf32>
      %68 = math.exp %67 : vector<32x256xf32>
      %cst_62 = arith.constant 1.000000e+00 : f32
      %69 = vector.broadcast %cst_62 : f32 to vector<32x256xf32>
      %70 = arith.addf %69, %68 : vector<32x256xf32>
      %71 = arith.divf %69, %70 : vector<32x256xf32>
      %72 = arith.mulf %71, %35 : vector<32x256xf32>
      %73 = math.tanh %50 : vector<32x256xf32>
      %74 = arith.mulf %63, %73 : vector<32x256xf32>
      %75 = arith.addf %72, %74 : vector<32x256xf32>
      %c0_63 = arith.constant 0 : index
      %c0_64 = arith.constant 0 : index
      %76 = vector.load %arg6[%c0_63, %c0_64] : memref<32x256xf32, #tpu.memory_space<vmem>>, vector<32x256xf32>
      %77 = arith.mulf %76, %75 : vector<32x256xf32>
      %78 = arith.addf %55, %77 : vector<32x256xf32>
      %79 = arith.negf %78 : vector<32x256xf32>
      %80 = math.exp %79 : vector<32x256xf32>
      %cst_65 = arith.constant 1.000000e+00 : f32
      %81 = vector.broadcast %cst_65 : f32 to vector<32x256xf32>
      %82 = arith.addf %81, %80 : vector<32x256xf32>
      %83 = arith.divf %81, %82 : vector<32x256xf32>
      %84 = math.tanh %75 : vector<32x256xf32>
      %85 = arith.mulf %83, %84 : vector<32x256xf32>
      %c0_66 = arith.constant 0 : index
      %c0_67 = arith.constant 0 : index
      %86 = vector.load %arg10[%c0_66, %c0_67] : memref<32x256xf32, #tpu.memory_space<vmem>>, vector<32x256xf32>
      tpu.vector_store %arg10[%c0_66, %c0_67], %75 {strides = array<i32>} : memref<32x256xf32, #tpu.memory_space<vmem>>, vector<32x256xf32>,
      %c0_68 = arith.constant 0 : index
      %c0_69 = arith.constant 0 : index
      %87 = vector.load %arg7[%c0_68, %c0_69] : memref<3x256xf32, #tpu.memory_space<vmem>>, vector<1x256xf32>
      %88 = vector.broadcast %87 : vector<1x256xf32> to vector<32x256xf32>
      %89 = arith.mulf %85, %88 : vector<32x256xf32>
      %c0_70 = arith.constant 0 : index
      %c0_71 = arith.constant 0 : index
      %c128_72 = arith.constant 128 : index
      %90 = vector.load %arg9[%c0_70, %c0_71, %c128_72] : memref<3x32x512xf32, #tpu.memory_space<vmem>>, vector<1x32x256xf32>
      %91 = vector.shape_cast %90 : vector<1x32x256xf32> to vector<32x256xf32>
      %92 = vector.shape_cast %89 : vector<32x256xf32> to vector<1x32x256xf32>
      tpu.vector_store %arg9[%c0_70, %c0_71, %c128_72], %92 {strides = array<i32>} : memref<3x32x512xf32, #tpu.memory_space<vmem>>, vector<1x32x256xf32>,
      %c1_73 = arith.constant 1 : index
      %c0_74 = arith.constant 0 : index
      %c128_75 = arith.constant 128 : index
      %93 = vector.load %arg9[%c1_73, %c0_74, %c128_75] : memref<3x32x512xf32, #tpu.memory_space<vmem>>, vector<1x32x256xf32>
      %94 = vector.shape_cast %93 : vector<1x32x256xf32> to vector<32x256xf32>
      %95 = vector.shape_cast %85 : vector<32x256xf32> to vector<1x32x256xf32>
      tpu.vector_store %arg9[%c1_73, %c0_74, %c128_75], %95 {strides = array<i32>} : memref<3x32x512xf32, #tpu.memory_space<vmem>>, vector<1x32x256xf32>,
      %c2_76 = arith.constant 2 : index
      %c0_77 = arith.constant 0 : index
      %96 = vector.load %arg7[%c2_76, %c0_77] : memref<3x256xf32, #tpu.memory_space<vmem>>, vector<1x256xf32>
      %97 = vector.broadcast %96 : vector<1x256xf32> to vector<32x256xf32>
      %98 = arith.mulf %85, %97 : vector<32x256xf32>
      %c2_78 = arith.constant 2 : index
      %c0_79 = arith.constant 0 : index
      %c128_80 = arith.constant 128 : index
      %99 = vector.load %arg9[%c2_78, %c0_79, %c128_80] : memref<3x32x512xf32, #tpu.memory_space<vmem>>, vector<1x32x256xf32>
      %100 = vector.shape_cast %99 : vector<1x32x256xf32> to vector<32x256xf32>
      %101 = vector.shape_cast %98 : vector<32x256xf32> to vector<1x32x256xf32>
      tpu.vector_store %arg9[%c2_78, %c0_79, %c128_80], %101 {strides = array<i32>} : memref<3x32x512xf32, #tpu.memory_space<vmem>>, vector<1x32x256xf32>,
      %c0_81 = arith.constant 0 : index
      %102 = arith.index_cast %arg13 : i32 to index
      %c0_82 = arith.constant 0 : index
      %c0_83 = arith.constant 0 : index
      %103 = vector.load %arg8[%c0_81, %102, %c0_82, %c0_83] : memref<1x8x32x256xf32, #tpu.memory_space<vmem>>, vector<1x1x32x256xf32>
      %104 = vector.shape_cast %103 : vector<1x1x32x256xf32> to vector<32x256xf32>
      %105 = vector.shape_cast %85 : vector<32x256xf32> to vector<1x1x32x256xf32>
      tpu.vector_store %arg8[%c0_81, %102, %c0_82, %c0_83], %105 {strides = array<i32>} : memref<1x8x32x256xf32, #tpu.memory_space<vmem>>, vector<1x1x32x256xf32>,
    }
    %c8_i32_2 = arith.constant 8 : i32
    return
  }
  func.func @transform_0(%arg0: i32, %arg1: i32) -> (i32, i32, i32, i32) {
    %c0_i32 = arith.constant 0 : i32
    %c0_i32_0 = arith.constant 0 : i32
    %c0_i32_1 = arith.constant 0 : i32
    return %arg0, %arg1, %c0_i32, %c0_i32_0 : i32, i32, i32, i32
  }
  func.func @transform_1(%arg0: i32, %arg1: i32) -> (i32, i32) {
    %c0_i32 = arith.constant 0 : i32
    %c0_i32_0 = arith.constant 0 : i32
    %c0_i32_1 = arith.constant 0 : i32
    return %c0_i32, %c0_i32_0 : i32, i32
  }
  func.func @transform_2(%arg0: i32, %arg1: i32) -> (i32, i32) {
    %c0_i32 = arith.constant 0 : i32
    %c0_i32_0 = arith.constant 0 : i32
    %c0_i32_1 = arith.constant 0 : i32
    return %c0_i32, %c0_i32_0 : i32, i32
  }
  func.func @transform_3(%arg0: i32, %arg1: i32) -> (i32, i32) {
    %c0_i32 = arith.constant 0 : i32
    %c0_i32_0 = arith.constant 0 : i32
    %c0_i32_1 = arith.constant 0 : i32
    return %c0_i32, %c0_i32_0 : i32, i32
  }
  func.func @transform_4(%arg0: i32, %arg1: i32) -> (i32, i32) {
    %c0_i32 = arith.constant 0 : i32
    %c0_i32_0 = arith.constant 0 : i32
    %c0_i32_1 = arith.constant 0 : i32
    return %c0_i32, %c0_i32_0 : i32, i32
  }
  func.func @transform_5(%arg0: i32, %arg1: i32) -> (i32, i32) {
    %c0_i32 = arith.constant 0 : i32
    %c0_i32_0 = arith.constant 0 : i32
    %c0_i32_1 = arith.constant 0 : i32
    return %c0_i32, %c0_i32_0 : i32, i32
  }
  func.func @transform_6(%arg0: i32, %arg1: i32) -> (i32, i32, i32, i32) {
    %c0_i32 = arith.constant 0 : i32
    %c0_i32_0 = arith.constant 0 : i32
    %c0_i32_1 = arith.constant 0 : i32
    return %arg0, %arg1, %c0_i32, %c0_i32_0 : i32, i32, i32, i32
  }
}

</mosaic_0001>

<llo_original>
// kernel: tpu_custom_call.1
$region0: #{tpu_custom_call.1}
  #allocation0 [shape = 'u32[]', space=smem, size = 0x4, offset = 0x4, fixed_abs, tag = 'smem constant byte address 0x4 - core index']
  #allocation1 [shape = 'u32[72,128]{1,0:T(1,128)}', space=vmem, size = 0x9000, scoped, tag = 'internal scratch']
  #allocation2 [shape = 'f32[3,32,512]{2,1,0:T(8,128)}', space=vmem, size = 0x30000, scoped, tag = 'scratch operand']
  #allocation3 [shape = 'f32[32,256]{1,0:T(8,128)}', space=vmem, size = 0x8000, scoped, tag = 'scratch operand']
  #allocation4 [shape = 'f32[288,256]{1,0:T(8,128)}', space=vmem, size = 0x48000, scoped, tag = 'scratch operand']
  #allocation5 [shape = 'f32[128,256]{1,0:T(8,128)}', space=vmem, size = 0x20000, scoped, tag = 'scratch operand']
  %s0 = inlined_call_operand.hbm [shape: f32[2,8,128,256], index: 0, kind: input, shape index: {}]
  %s1 = inlined_call_operand.vmem [shape: f32[128,288], index: 1, kind: input, shape index: {}]
  %s2 = inlined_call_operand.hbm [shape: f32[32,256], index: 2, kind: input, shape index: {}]
  %s3 = inlined_call_operand.hbm [shape: f32[32,256], index: 3, kind: input, shape index: {}]
  %s4 = inlined_call_operand.hbm [shape: f32[32,256], index: 4, kind: input, shape index: {}]
  %s5 = inlined_call_operand.hbm [shape: f32[3,256], index: 5, kind: input, shape index: {}]
  %s6 = inlined_call_operand.hbm [shape: f32[2,8,32,256], index: 6, kind: output, shape index: {}]
  %s7 = sld [smem:[#allocation0]]
  $region88: #{tpu_custom_call.1} parent=0
    _
  %s9 = ssub.s32 1, %s7
  %s10 = scalar_select 0, %s9, %s7
  $region1: #{tpu_custom_call.1} parent=0
    #allocation6 [shape = 'u8[2097152]{0}', space=vmem, size = 0x200000, scoped, tag = 'input window, operand 0']
    #allocation7 [shape = 's32[2]{0}', space=sflag, size = 0x8, scoped, tag = 'scoped memory for tpu_custom_call.1']
    #allocation8 [shape = 's32[2]{0}', space=sflag, size = 0x8, scoped, tag = 'scoped memory for tpu_custom_call.1']
    #allocation9 [shape = 'u8[32768]{0}', space=vmem, size = 0x8000, scoped, tag = 'input window, operand 2, single buffered']
    #allocation10 [shape = 's32[1]{0}', space=sflag, size = 0x4, scoped, tag = 'scoped memory for tpu_custom_call.1']
    #allocation11 [shape = 'u8[32768]{0}', space=vmem, size = 0x8000, scoped, tag = 'input window, operand 3, single buffered']
    #allocation12 [shape = 'u8[32768]{0}', space=vmem, size = 0x8000, scoped, tag = 'input window, operand 4, single buffered']
    #allocation13 [shape = 's32[1]{0}', space=sflag, size = 0x4, scoped, tag = 'scoped memory for tpu_custom_call.1']
    #allocation14 [shape = 'u8[4096]{0}', space=vmem, size = 0x1000, scoped, tag = 'input window, operand 5, single buffered']
    #allocation15 [shape = 'u8[524288]{0}', space=vmem, size = 0x80000, scoped, tag = 'output window, operand 0']
    %11 = vsyncpa [#allocation7], 0
    %s12 = scalar_lea.sflag [#allocation7], 1
    %13 = vsyncpa %s12, 0
    %14 = vsyncpa [#allocation10], 0
    %15 = vsyncpa [#allocation13], 0
    %16 = vsyncpa [#allocation8], 0
    %s17 = scalar_lea.sflag [#allocation8], 1
    %18 = vsyncpa %s17, 0
    loop: start=0, step=1, limit=4
    $region2: #{tpu_custom_call.1} parent=1 // loop_pre_header
      _
    $region3: #{tpu_custom_call.1} parent=1 // loop_header
      %s20 = sphi 0, %s24
      %p21 = scmp.ge.s32.totalorder %s20, 4
      %s27 = sphi 0, %s39
      %s28 = sphi 0, %s35
      %s29 = sphi 0, %s27
      %s30 = sphi 0, %s28
      %s31 = sphi 0, %s29
      %s32 = sphi 0, %s30
      %s44 = sphi 0, %s46
      %s47 = sphi 0, %s44
      %s48 = sphi 0, %s47
      %s64 = sphi 0, %s48
      %s68 = sphi 0, %s68
      %s70 = sphi 0, %s68
      %s71 = sphi 0, %s70
      %s85 = sphi 0, %s71
      %s89 = sphi 0, %s89
      %s91 = sphi 0, %s89
      %s92 = sphi 0, %s91
      %s106 = sphi 0, %s92
      %s110 = sphi 0, %s110
      %s112 = sphi 0, %s110
      %s113 = sphi 0, %s112
      %s127 = sphi 0, %s113
      %s131 = sphi 0, %s131
      %s133 = sphi 0, %s131
      %s134 = sphi 0, %s133
      %s148 = sphi 0, %s134
      %s152 = sphi 0, %s152
      %s154 = sphi 0, %s152
      %s155 = sphi 0, %s154
      %s169 = sphi 0, %s155
      %s177 = sphi 0, %s179
      %s180 = sphi 0, %s177
      %s181 = sphi 0, %s180
      %s197 = sphi 0, %s181
    $region4: #{tpu_custom_call.1} parent=1 // loop_header_branch
      %23 = sbr.rel (%p21) target = $region8
    $region5: #{tpu_custom_call.1} parent=1 // loop_body
      %s25 = ssub.s32 %s20, 1
      %s26 = ssub.s32 %s20, 2
      %s33 = sadd.s32 1, %s28
      %p34 = scmp.ge.s32.totalorder %s33, 1
      %s35 = scalar_select %p34, 0, %s33
      %s36 = sadd.s32 1, %s27
      %s37 = scalar_select %p34, %s36, %s27
      %p38 = scmp.ge.s32.totalorder %s37, 2
      %s39 = scalar_select %p38, 0, %s37
      %s40 = ssub.s32 %s27, %s39
      %s41 = ssub.s32 %s28, %s35
      %s42 = sor.u32 %s40, %s41
      %p43 = scmp.eq.s32.totalorder %s42, 0
      %s45 = sadd.s32 %s44, 1
      %s46 = scalar_select %p43, %s44, %s45
      %p49 = pneg %p43
      %p50 = scmp.eq.s32.totalorder %s20, 1
      %p51 = por %p49, %p50
      %p52 = scmp.ne.s32.totalorder %s44, %s47
      %p53 = scmp.eq.s32.totalorder %s20, 0
      %p54 = por %p52, %p53
      %p55 = scmp.ne.s32.totalorder %s44, %s47
      %p56 = scmp.eq.s32.totalorder %s25, 1
      %p57 = por %p55, %p56
      %p58 = scmp.ne.s32.totalorder %s47, %s48
      %p59 = scmp.eq.s32.totalorder %s25, 0
      %p60 = por %p58, %p59
      %p61 = scmp.ne.s32.totalorder %s47, %s48
      %p62 = scmp.eq.s32.totalorder %s26, 1
      %p63 = por %p61, %p62
      %p65 = scmp.ne.s32.totalorder %s48, %s64
      %p66 = scmp.eq.s32.totalorder %s26, 0
      %p67 = por %p65, %p66
      %s69 = sadd.s32 %s68, 1
      %p72 = scmp.eq.s32.totalorder %s20, 1
      %p73 = scmp.ne.s32.totalorder %s68, %s70
      %p74 = scmp.eq.s32.totalorder %s20, 0
      %p75 = por %p73, %p74
      %p76 = scmp.ne.s32.totalorder %s68, %s70
      %p77 = scmp.eq.s32.totalorder %s25, 1
      %p78 = por %p76, %p77
      %p79 = scmp.ne.s32.totalorder %s70, %s71
      %p80 = scmp.eq.s32.totalorder %s25, 0
      %p81 = por %p79, %p80
      %p82 = scmp.ne.s32.totalorder %s70, %s71
      %p83 = scmp.eq.s32.totalorder %s26, 1
      %p84 = por %p82, %p83
      %p86 = scmp.ne.s32.totalorder %s71, %s85
      %p87 = scmp.eq.s32.totalorder %s26, 0
      %p88 = por %p86, %p87
      %s90 = sadd.s32 %s89, 1
      %p93 = scmp.eq.s32.totalorder %s20, 1
      %p94 = scmp.ne.s32.totalorder %s89, %s91
      %p95 = scmp.eq.s32.totalorder %s20, 0
      %p96 = por %p94, %p95
      %p97 = scmp.ne.s32.totalorder %s89, %s91
      %p98 = scmp.eq.s32.totalorder %s25, 1
      %p99 = por %p97, %p98
      %p100 = scmp.ne.s32.totalorder %s91, %s92
      %p101 = scmp.eq.s32.totalorder %s25, 0
      %p102 = por %p100, %p101
      %p103 = scmp.ne.s32.totalorder %s91, %s92
      %p104 = scmp.eq.s32.totalorder %s26, 1
      %p105 = por %p103, %p104
      %p107 = scmp.ne.s32.totalorder %s92, %s106
      %p108 = scmp.eq.s32.totalorder %s26, 0
      %p109 = por %p107, %p108
      %s111 = sadd.s32 %s110, 1
      %p114 = scmp.eq.s32.totalorder %s20, 1
      %p115 = scmp.ne.s32.totalorder %s110, %s112
      %p116 = scmp.eq.s32.totalorder %s20, 0
      %p117 = por %p115, %p116
      %p118 = scmp.ne.s32.totalorder %s110, %s112
      %p119 = scmp.eq.s32.totalorder %s25, 1
      %p120 = por %p118, %p119
      %p121 = scmp.ne.s32.totalorder %s112, %s113
      %p122 = scmp.eq.s32.totalorder %s25, 0
      %p123 = por %p121, %p122
      %p124 = scmp.ne.s32.totalorder %s112, %s113
      %p125 = scmp.eq.s32.totalorder %s26, 1
      %p126 = por %p124, %p125
      %p128 = scmp.ne.s32.totalorder %s113, %s127
      %p129 = scmp.eq.s32.totalorder %s26, 0
      %p130 = por %p128, %p129
      %s132 = sadd.s32 %s131, 1
      %p135 = scmp.eq.s32.totalorder %s20, 1
      %p136 = scmp.ne.s32.totalorder %s131, %s133
      %p137 = scmp.eq.s32.totalorder %s20, 0
      %p138 = por %p136, %p137
      %p139 = scmp.ne.s32.totalorder %s131, %s133
      %p140 = scmp.eq.s32.totalorder %s25, 1
      %p141 = por %p139, %p140
      %p142 = scmp.ne.s32.totalorder %s133, %s134
      %p143 = scmp.eq.s32.totalorder %s25, 0
      %p144 = por %p142, %p143
      %p145 = scmp.ne.s32.totalorder %s133, %s134
      %p146 = scmp.eq.s32.totalorder %s26, 1
      %p147 = por %p145, %p146
      %p149 = scmp.ne.s32.totalorder %s134, %s148
      %p150 = scmp.eq.s32.totalorder %s26, 0
      %p151 = por %p149, %p150
      %s153 = sadd.s32 %s152, 1
      %p156 = scmp.eq.s32.totalorder %s20, 1
      %p157 = scmp.ne.s32.totalorder %s152, %s154
      %p158 = scmp.eq.s32.totalorder %s20, 0
      %p159 = por %p157, %p158
      %p160 = scmp.ne.s32.totalorder %s152, %s154
      %p161 = scmp.eq.s32.totalorder %s25, 1
      %p162 = por %p160, %p161
      %p163 = scmp.ne.s32.totalorder %s154, %s155
      %p164 = scmp.eq.s32.totalorder %s25, 0
      %p165 = por %p163, %p164
      %p166 = scmp.ne.s32.totalorder %s154, %s155
      %p167 = scmp.eq.s32.totalorder %s26, 1
      %p168 = por %p166, %p167
      %p170 = scmp.ne.s32.totalorder %s155, %s169
      %p171 = scmp.eq.s32.totalorder %s26, 0
      %p172 = por %p170, %p171
      %s173 = ssub.s32 %s27, %s39
      %s174 = ssub.s32 %s28, %s35
      %s175 = sor.u32 %s173, %s174
      %p176 = scmp.eq.s32.totalorder %s175, 0
      %s178 = sadd.s32 %s177, 1
      %s179 = scalar_select %p176, %s177, %s178
      %p182 = pneg %p176
      %p183 = scmp.eq.s32.totalorder %s20, 1
      %p184 = por %p182, %p183
      %p185 = scmp.ne.s32.totalorder %s177, %s180
      %p186 = scmp.eq.s32.totalorder %s20, 0
      %p187 = por %p185, %p186
      %p188 = scmp.ne.s32.totalorder %s177, %s180
      %p189 = scmp.eq.s32.totalorder %s25, 1
      %p190 = por %p188, %p189
      %p191 = scmp.ne.s32.totalorder %s180, %s181
      %p192 = scmp.eq.s32.totalorder %s25, 0
      %p193 = por %p191, %p192
      %p194 = scmp.ne.s32.totalorder %s180, %s181
      %p195 = scmp.eq.s32.totalorder %s26, 1
      %p196 = por %p194, %p195
      %p198 = scmp.ne.s32.totalorder %s181, %s197
      %p199 = scmp.eq.s32.totalorder %s26, 0
      %p200 = por %p198, %p199
      %p201 = scmp.le.s32.totalorder 1, %s20
      %p202 = scmp.lt.s32.totalorder %s20, 3
      %p203 = pnand %p201, %p202
      %p204 = pneg %p203
      // Predicated region
      $region9: #{tpu_custom_call.1} parent=5 // pred_check
        _
      $region10: #{tpu_custom_call.1} parent=5 // pred_check_branch
        %206 = sbr.rel (%p203) target = $region12
      $region11: #{tpu_custom_call.1} parent=5 // pred_region
        %s207 = ssub.s32 %s20, 1
        // Predicated region
        $region13: #{tpu_custom_call.1} parent=11 // pred_check
          %p208 = pneg %p81
        $region14: #{tpu_custom_call.1} parent=11 // pred_check_branch
          %210 = sbr.rel (%p208) target = $region16
        $region15: #{tpu_custom_call.1} parent=11 // pred_region
          _
        $region16: #{tpu_custom_call.1} parent=11 // pred_fallthru
          _
        // Predicated region
        $region17: #{tpu_custom_call.1} parent=11 // pred_check
          %p211 = pneg %p102
        $region18: #{tpu_custom_call.1} parent=11 // pred_check_branch
          %213 = sbr.rel (%p211) target = $region20
        $region19: #{tpu_custom_call.1} parent=11 // pred_region
          %215 = vsyncadd [#allocation10], 0
          %s216 = sshll.u32 %s2, 4
          %s217 = int_to_ptr.hbm [resolvable:$true] %s216
          %s218 = sshll.u32 [#allocation9], 4
          %s219 = int_to_ptr.vmem [resolvable:$true] %s218
          %224 = dma.hbm_to_vmem [thread:$0]  %s217, 1024, %s219, [#allocation10], 256, 256, 16
        $region20: #{tpu_custom_call.1} parent=11 // pred_fallthru
          _
        // Predicated region
        $region21: #{tpu_custom_call.1} parent=11 // pred_check
          %p225 = pneg %p123
        $region22: #{tpu_custom_call.1} parent=11 // pred_check_branch
          %227 = sbr.rel (%p225) target = $region24
        $region23: #{tpu_custom_call.1} parent=11 // pred_region
          %229 = vsyncadd [#allocation10], 0
          %s230 = sshll.u32 %s3, 4
          %s231 = int_to_ptr.hbm [resolvable:$true] %s230
          %s232 = sshll.u32 [#allocation11], 4
          %s233 = int_to_ptr.vmem [resolvable:$true] %s232
          %238 = dma.hbm_to_vmem [thread:$0]  %s231, 1024, %s233, [#allocation10], 256, 256, 16
        $region24: #{tpu_custom_call.1} parent=11 // pred_fallthru
          _
        // Predicated region
        $region25: #{tpu_custom_call.1} parent=11 // pred_check
          %p239 = pneg %p144
        $region26: #{tpu_custom_call.1} parent=11 // pred_check_branch
          %241 = sbr.rel (%p239) target = $region28
        $region27: #{tpu_custom_call.1} parent=11 // pred_region
          %243 = vsyncadd [#allocation13], 0
          %s244 = sshll.u32 %s4, 4
          %s245 = int_to_ptr.hbm [resolvable:$true] %s244
          %s246 = sshll.u32 [#allocation12], 4
          %s247 = int_to_ptr.vmem [resolvable:$true] %s246
          %252 = dma.hbm_to_vmem [thread:$0]  %s245, 1024, %s247, [#allocation13], 256, 256, 16
        $region28: #{tpu_custom_call.1} parent=11 // pred_fallthru
          _
        // Predicated region
        $region29: #{tpu_custom_call.1} parent=11 // pred_check
          %p253 = pneg %p165
        $region30: #{tpu_custom_call.1} parent=11 // pred_check_branch
          %255 = sbr.rel (%p253) target = $region32
        $region31: #{tpu_custom_call.1} parent=11 // pred_region
          %257 = vsyncadd [#allocation13], 0
          %s259 = sshll.u32 %s5, 4
          %s260 = int_to_ptr.hbm [resolvable:$true] %s259
          %s261 = sshll.u32 [#allocation14], 4
          %s262 = int_to_ptr.vmem [resolvable:$true] %s261
          %264 = dma.hbm_to_vmem [thread:$0]  %s260, 128, %s262, [#allocation13]
        $region32: #{tpu_custom_call.1} parent=11 // pred_fallthru
          _
      $region12: #{tpu_custom_call.1} parent=5 // pred_fallthru
        _
      %p265 = scmp.lt.s32.totalorder %s20, 2
      // Predicated region
      $region33: #{tpu_custom_call.1} parent=5 // pred_check
        %p266 = pneg %p265
      $region34: #{tpu_custom_call.1} parent=5 // pred_check_branch
        %268 = sbr.rel (%p266) target = $region36
      $region35: #{tpu_custom_call.1} parent=5 // pred_region
        // Predicated region
        $region37: #{tpu_custom_call.1} parent=35 // pred_check
          %p269 = pneg %p54
        $region38: #{tpu_custom_call.1} parent=35 // pred_check_branch
          %271 = sbr.rel (%p269) target = $region40
        $region39: #{tpu_custom_call.1} parent=35 // pred_region
          %s272 = sand.u32 %s44, 1
          %s273 = scalar_lea.sflag [#allocation7], %s272
          %s274 = sand.u32 %s44, 1
          %s275 = smul.addr %s274, 2048
          %s276 = scalar_lea.vmem [#allocation6], %s275
          %s277 = smul.u32 8, %s28
          %279 = vsyncadd %s273, 0
          %s280 = smul.addr %s277, 32
          %s281 = smul.addr %s27, 256
          %s282 = sadd.s32 %s280, %s281
          %s283 = smul.addr %s282, 8
          %s284 = scalar_lea.hbm %s0, %s283
          %s285 = sshll.u32 %s284, 4
          %s286 = int_to_ptr.hbm [resolvable:$true] %s285
          %s287 = sshll.u32 %s276, 4
          %s288 = int_to_ptr.vmem [resolvable:$true] %s287
          %293 = dma.hbm_to_vmem [thread:$0]  %s286, 32768, %s288, %s273, 256, 256, 16
        $region40: #{tpu_custom_call.1} parent=35 // pred_fallthru
          _
      $region36: #{tpu_custom_call.1} parent=5 // pred_fallthru
        _
      %p294 = scmp.le.s32.totalorder 1, %s20
      %p295 = scmp.lt.s32.totalorder %s20, 3
      %p296 = pnand %p294, %p295
      %p297 = pneg %p296
      // Predicated region
      $region41: #{tpu_custom_call.1} parent=5 // pred_check
        _
      $region42: #{tpu_custom_call.1} parent=5 // pred_check_branch
        %299 = sbr.rel (%p296) target = $region44
      $region43: #{tpu_custom_call.1} parent=5 // pred_region
        %s300 = ssub.s32 %s20, 1
        %s301 = sand.u32 %s47, 1
        %s302 = scalar_lea.sflag [#allocation7], %s301
        %s303 = sand.u32 %s47, 1
        %s304 = smul.addr %s303, 2048
        %s305 = scalar_lea.vmem [#allocation6], %s304
        // Predicated region
        $region45: #{tpu_custom_call.1} parent=43 // pred_check
          %p306 = pneg %p60
        $region46: #{tpu_custom_call.1} parent=43 // pred_check_branch
          %308 = sbr.rel (%p306) target = $region48
        $region47: #{tpu_custom_call.1} parent=43 // pred_region
          %310 = dma.done %s302, 32768
        $region48: #{tpu_custom_call.1} parent=43 // pred_fallthru
          _
        // Predicated region
        $region49: #{tpu_custom_call.1} parent=43 // pred_check
          %p311 = pneg %p102
        $region50: #{tpu_custom_call.1} parent=43 // pred_check_branch
          %313 = sbr.rel (%p311) target = $region52
        $region51: #{tpu_custom_call.1} parent=43 // pred_region
          %315 = dma.done [#allocation10], 1024
        $region52: #{tpu_custom_call.1} parent=43 // pred_fallthru
          _
        // Predicated region
        $region53: #{tpu_custom_call.1} parent=43 // pred_check
          %p316 = pneg %p123
        $region54: #{tpu_custom_call.1} parent=43 // pred_check_branch
          %318 = sbr.rel (%p316) target = $region56
        $region55: #{tpu_custom_call.1} parent=43 // pred_region
          %320 = dma.done [#allocation10], 1024
        $region56: #{tpu_custom_call.1} parent=43 // pred_fallthru
          _
        // Predicated region
        $region57: #{tpu_custom_call.1} parent=43 // pred_check
          %p321 = pneg %p144
        $region58: #{tpu_custom_call.1} parent=43 // pred_check_branch
          %323 = sbr.rel (%p321) target = $region60
        $region59: #{tpu_custom_call.1} parent=43 // pred_region
          %325 = dma.done [#allocation13], 1024
        $region60: #{tpu_custom_call.1} parent=43 // pred_fallthru
          _
        // Predicated region
        $region61: #{tpu_custom_call.1} parent=43 // pred_check
          %p326 = pneg %p165
        $region62: #{tpu_custom_call.1} parent=43 // pred_check_branch
          %328 = sbr.rel (%p326) target = $region64
        $region63: #{tpu_custom_call.1} parent=43 // pred_region
          %330 = dma.done [#allocation13], 128
        $region64: #{tpu_custom_call.1} parent=43 // pred_fallthru
          _
        %s331 = sand.u32 %s47, 1
        %s332 = scalar_lea.sflag [#allocation7], %s331
        %s333 = sand.u32 %s47, 1
        %s334 = smul.addr %s333, 2048
        %s335 = scalar_lea.vmem [#allocation6], %s334
        %p336 = pneg %p60
        %p337 = pneg %p57
        %p338 = pneg %p81
        %p339 = pneg %p78
        %p340 = pneg %p102
        %p341 = pneg %p99
        %p342 = pneg %p123
        %p343 = pneg %p120
        %p344 = pneg %p144
        %p345 = pneg %p141
        %p346 = pneg %p165
        %p347 = pneg %p162
        %p348 = pneg %p193
        %p349 = pneg %p190
        %s350 = sand.u32 %s180, 1
        %s351 = scalar_lea.sflag [#allocation8], %s350
        %s352 = sand.u32 %s180, 1
        %s353 = smul.addr %s352, 512
        %s354 = scalar_lea.vmem [#allocation15], %s353
        %s355 = smul.u32 8, %s30
        %s356 = smul.u32 8, %s30
        %p357 = scmp.eq.s32.totalorder %s30, 0
        // Predicated region
        $region65: #{tpu_custom_call.1} parent=43 // pred_check
          %p358 = pneg %p357
        $region66: #{tpu_custom_call.1} parent=43 // pred_check_branch
          %360 = sbr.rel (%p358) target = $region68
        $region67: #{tpu_custom_call.1} parent=43 // pred_region
          %361 = vst [vmem:[#allocation2] sm:$0xff] 0.0
          %362 = vst [vmem:[#allocation2 + $0x8] sm:$0xff] 0.0
          %363 = vst [vmem:[#allocation2 + $0x10] sm:$0xff] 0.0
          %364 = vst [vmem:[#allocation2 + $0x18] sm:$0xff] 0.0
          %365 = vst [vmem:[#allocation2 + $0x20] sm:$0xff] 0.0
          %366 = vst [vmem:[#allocation2 + $0x28] sm:$0xff] 0.0
          %367 = vst [vmem:[#allocation2 + $0x30] sm:$0xff] 0.0
          %368 = vst [vmem:[#allocation2 + $0x38] sm:$0xff] 0.0
          %369 = vst [vmem:[#allocation2 + $0x40] sm:$0xff] 0.0
          %370 = vst [vmem:[#allocation2 + $0x48] sm:$0xff] 0.0
          %371 = vst [vmem:[#allocation2 + $0x50] sm:$0xff] 0.0
          %372 = vst [vmem:[#allocation2 + $0x58] sm:$0xff] 0.0
          %373 = vst [vmem:[#allocation2 + $0x60] sm:$0xff] 0.0
          %374 = vst [vmem:[#allocation2 + $0x68] sm:$0xff] 0.0
          %375 = vst [vmem:[#allocation2 + $0x70] sm:$0xff] 0.0
          %376 = vst [vmem:[#allocation2 + $0x78] sm:$0xff] 0.0
          %377 = vst [vmem:[#allocation2 + $0x80] sm:$0xff] 0.0
          %378 = vst [vmem:[#allocation2 + $0x88] sm:$0xff] 0.0
          %379 = vst [vmem:[#allocation2 + $0x90] sm:$0xff] 0.0
          %380 = vst [vmem:[#allocation2 + $0x98] sm:$0xff] 0.0
          %381 = vst [vmem:[#allocation2 + $0xa0] sm:$0xff] 0.0
          %382 = vst [vmem:[#allocation2 + $0xa8] sm:$0xff] 0.0
          %383 = vst [vmem:[#allocation2 + $0xb0] sm:$0xff] 0.0
          %384 = vst [vmem:[#allocation2 + $0xb8] sm:$0xff] 0.0
          %385 = vst [vmem:[#allocation2 + $0xc0] sm:$0xff] 0.0
          %386 = vst [vmem:[#allocation2 + $0xc8] sm:$0xff] 0.0
          %387 = vst [vmem:[#allocation2 + $0xd0] sm:$0xff] 0.0
          %388 = vst [vmem:[#allocation2 + $0xd8] sm:$0xff] 0.0
          %389 = vst [vmem:[#allocation2 + $0xe0] sm:$0xff] 0.0
          %390 = vst [vmem:[#allocation2 + $0xe8] sm:$0xff] 0.0
          %391 = vst [vmem:[#allocation2 + $0xf0] sm:$0xff] 0.0
          %392 = vst [vmem:[#allocation2 + $0xf8] sm:$0xff] 0.0
          %393 = vst [vmem:[#allocation2 + $0x100] sm:$0xff] 0.0
          %394 = vst [vmem:[#allocation2 + $0x108] sm:$0xff] 0.0
          %395 = vst [vmem:[#allocation2 + $0x110] sm:$0xff] 0.0
          %396 = vst [vmem:[#allocation2 + $0x118] sm:$0xff] 0.0
          %397 = vst [vmem:[#allocation2 + $0x120] sm:$0xff] 0.0
          %398 = vst [vmem:[#allocation2 + $0x128] sm:$0xff] 0.0
          %399 = vst [vmem:[#allocation2 + $0x130] sm:$0xff] 0.0
          %400 = vst [vmem:[#allocation2 + $0x138] sm:$0xff] 0.0
          %401 = vst [vmem:[#allocation2 + $0x140] sm:$0xff] 0.0
          %402 = vst [vmem:[#allocation2 + $0x148] sm:$0xff] 0.0
          %403 = vst [vmem:[#allocation2 + $0x150] sm:$0xff] 0.0
          %404 = vst [vmem:[#allocation2 + $0x158] sm:$0xff] 0.0
          %405 = vst [vmem:[#allocation2 + $0x160] sm:$0xff] 0.0
          %406 = vst [vmem:[#allocation2 + $0x168] sm:$0xff] 0.0
          %407 = vst [vmem:[#allocation2 + $0x170] sm:$0xff] 0.0
          %408 = vst [vmem:[#allocation2 + $0x178] sm:$0xff] 0.0
          %409 = vst [vmem:[#allocation3] sm:$0xff] 0.0
          %410 = vst [vmem:[#allocation3 + $0x8] sm:$0xff] 0.0
          %411 = vst [vmem:[#allocation3 + $0x10] sm:$0xff] 0.0
          %412 = vst [vmem:[#allocation3 + $0x18] sm:$0xff] 0.0
          %413 = vst [vmem:[#allocation3 + $0x20] sm:$0xff] 0.0
          %414 = vst [vmem:[#allocation3 + $0x28] sm:$0xff] 0.0
          %415 = vst [vmem:[#allocation3 + $0x30] sm:$0xff] 0.0
          %416 = vst [vmem:[#allocation3 + $0x38] sm:$0xff] 0.0
        $region68: #{tpu_custom_call.1} parent=43 // pred_fallthru
          _
        loop: start=0, step=1, limit=8
        $region69: #{tpu_custom_call.1} parent=43 // loop_pre_header
          _
        $region70: #{tpu_custom_call.1} parent=43 // loop_header
          %s418 = sphi 0, %s422
          %p419 = scmp.ge.s32.totalorder %s418, 8
        $region71: #{tpu_custom_call.1} parent=43 // loop_header_branch
          %421 = sbr.rel (%p419) target = $region75
        $region72: #{tpu_custom_call.1} parent=43 // loop_body
          %v423 = vld [vmem:[#allocation2] sm:$0xff]
          %v424 = vld [vmem:[#allocation2 + $0x8] sm:$0xff]
          %v425 = vld [vmem:[#allocation2 + $0x10] sm:$0xff]
          %v426 = vld [vmem:[#allocation2 + $0x20] sm:$0xff]
          %v427 = vld [vmem:[#allocation2 + $0x28] sm:$0xff]
          %v428 = vld [vmem:[#allocation2 + $0x30] sm:$0xff]
          %v429 = vld [vmem:[#allocation2 + $0x40] sm:$0xff]
          %v430 = vld [vmem:[#allocation2 + $0x48] sm:$0xff]
          %v431 = vld [vmem:[#allocation2 + $0x50] sm:$0xff]
          %v432 = vld [vmem:[#allocation2 + $0x60] sm:$0xff]
          %v433 = vld [vmem:[#allocation2 + $0x68] sm:$0xff]
          %v434 = vld [vmem:[#allocation2 + $0x70] sm:$0xff]
          %447 = vrot.lane.b32.xlu0 %v423, 17
          %v448 = vpop.permute.xlu0 %447
          %449 = vrot.lane.b32.xlu0 %v424, 17
          %v450 = vpop.permute.xlu0 %449
          %451 = vrot.lane.b32.xlu0 %v425, 17
          %v452 = vpop.permute.xlu0 %451
          %453 = vrot.lane.b32.xlu0 %v426, 17
          %v454 = vpop.permute.xlu0 %453
          %455 = vrot.lane.b32.xlu0 %v427, 17
          %v456 = vpop.permute.xlu0 %455
          %457 = vrot.lane.b32.xlu0 %v428, 17
          %v458 = vpop.permute.xlu0 %457
          %459 = vrot.lane.b32.xlu0 %v429, 17
          %v460 = vpop.permute.xlu0 %459
          %461 = vrot.lane.b32.xlu0 %v430, 17
          %v462 = vpop.permute.xlu0 %461
          %463 = vrot.lane.b32.xlu0 %v431, 17
          %v464 = vpop.permute.xlu0 %463
          %465 = vrot.lane.b32.xlu0 %v432, 17
          %v466 = vpop.permute.xlu0 %465
          %467 = vrot.lane.b32.xlu0 %v433, 17
          %v468 = vpop.permute.xlu0 %467
          %469 = vrot.lane.b32.xlu0 %v434, 17
          %v470 = vpop.permute.xlu0 %469
          %vm471 = vcmask 138240
          %v472 = vsel %vm471, %v448, %v450
          %v473 = vsel %vm471, %v450, %v452
          %v474 = vsel %vm471, %v454, %v456
          %v475 = vsel %vm471, %v456, %v458
          %v476 = vsel %vm471, %v460, %v462
          %v477 = vsel %vm471, %v462, %v464
          %v478 = vsel %vm471, %v466, %v468
          %v479 = vsel %vm471, %v468, %v470
          %488 = vst [vmem:[#allocation4] sm:$0xff] %v472
          %489 = vst [vmem:[#allocation4 + $0x8] sm:$0xff] %v473
          %490 = vst [vmem:[#allocation4 + $0x10] sm:$0xff] %v474
          %491 = vst [vmem:[#allocation4 + $0x18] sm:$0xff] %v475
          %492 = vst [vmem:[#allocation4 + $0x20] sm:$0xff] %v476
          %493 = vst [vmem:[#allocation4 + $0x28] sm:$0xff] %v477
          %494 = vst [vmem:[#allocation4 + $0x30] sm:$0xff] %v478
          %495 = vst [vmem:[#allocation4 + $0x38] sm:$0xff] %v479
          %s496 = scalar_lea.vmem [#allocation2], 128
          %v497 = vld [vmem:[%s496] sm:$0xff]
          %v498 = vld [vmem:[%s496 + $0x8] sm:$0xff]
          %v499 = vld [vmem:[%s496 + $0x10] sm:$0xff]
          %v500 = vld [vmem:[%s496 + $0x20] sm:$0xff]
          %v501 = vld [vmem:[%s496 + $0x28] sm:$0xff]
          %v502 = vld [vmem:[%s496 + $0x30] sm:$0xff]
          %v503 = vld [vmem:[%s496 + $0x40] sm:$0xff]
          %v504 = vld [vmem:[%s496 + $0x48] sm:$0xff]
          %v505 = vld [vmem:[%s496 + $0x50] sm:$0xff]
          %v506 = vld [vmem:[%s496 + $0x60] sm:$0xff]
          %v507 = vld [vmem:[%s496 + $0x68] sm:$0xff]
          %v508 = vld [vmem:[%s496 + $0x70] sm:$0xff]
          %521 = vrot.lane.b32.xlu0 %v497, 16
          %v522 = vpop.permute.xlu0 %521
          %523 = vrot.lane.b32.xlu0 %v498, 16
          %v524 = vpop.permute.xlu0 %523
          %525 = vrot.lane.b32.xlu0 %v499, 16
          %v526 = vpop.permute.xlu0 %525
          %527 = vrot.lane.b32.xlu0 %v500, 16
          %v528 = vpop.permute.xlu0 %527
          %529 = vrot.lane.b32.xlu0 %v501, 16
          %v530 = vpop.permute.xlu0 %529
          %531 = vrot.lane.b32.xlu0 %v502, 16
          %v532 = vpop.permute.xlu0 %531
          %533 = vrot.lane.b32.xlu0 %v503, 16
          %v534 = vpop.permute.xlu0 %533
          %535 = vrot.lane.b32.xlu0 %v504, 16
          %v536 = vpop.permute.xlu0 %535
          %537 = vrot.lane.b32.xlu0 %v505, 16
          %v538 = vpop.permute.xlu0 %537
          %539 = vrot.lane.b32.xlu0 %v506, 16
          %v540 = vpop.permute.xlu0 %539
          %541 = vrot.lane.b32.xlu0 %v507, 16
          %v542 = vpop.permute.xlu0 %541
          %543 = vrot.lane.b32.xlu0 %v508, 16
          %v544 = vpop.permute.xlu0 %543
          %vm545 = vcmask 130048
          %v546 = vsel %vm545, %v522, %v524
          %v547 = vsel %vm545, %v524, %v526
          %v548 = vsel %vm545, %v528, %v530
          %v549 = vsel %vm545, %v530, %v532
          %v550 = vsel %vm545, %v534, %v536
          %v551 = vsel %vm545, %v536, %v538
          %v552 = vsel %vm545, %v540, %v542
          %v553 = vsel %vm545, %v542, %v544
          %562 = vst [vmem:[#allocation4 + $0x40] sm:$0xff] %v546
          %563 = vst [vmem:[#allocation4 + $0x48] sm:$0xff] %v547
          %564 = vst [vmem:[#allocation4 + $0x50] sm:$0xff] %v548
          %565 = vst [vmem:[#allocation4 + $0x58] sm:$0xff] %v549
          %566 = vst [vmem:[#allocation4 + $0x60] sm:$0xff] %v550
          %567 = vst [vmem:[#allocation4 + $0x68] sm:$0xff] %v551
          %568 = vst [vmem:[#allocation4 + $0x70] sm:$0xff] %v552
          %569 = vst [vmem:[#allocation4 + $0x78] sm:$0xff] %v553
          %s570 = scalar_lea.vmem [#allocation2], 256
          %v571 = vld [vmem:[%s570] sm:$0xff]
          %v572 = vld [vmem:[%s570 + $0x8] sm:$0xff]
          %v573 = vld [vmem:[%s570 + $0x10] sm:$0xff]
          %v574 = vld [vmem:[%s570 + $0x20] sm:$0xff]
          %v575 = vld [vmem:[%s570 + $0x28] sm:$0xff]
          %v576 = vld [vmem:[%s570 + $0x30] sm:$0xff]
          %v577 = vld [vmem:[%s570 + $0x40] sm:$0xff]
          %v578 = vld [vmem:[%s570 + $0x48] sm:$0xff]
          %v579 = vld [vmem:[%s570 + $0x50] sm:$0xff]
          %v580 = vld [vmem:[%s570 + $0x60] sm:$0xff]
          %v581 = vld [vmem:[%s570 + $0x68] sm:$0xff]
          %v582 = vld [vmem:[%s570 + $0x70] sm:$0xff]
          %595 = vrot.lane.b32.xlu0 %v571, 15
          %v596 = vpop.permute.xlu0 %595
          %597 = vrot.lane.b32.xlu0 %v572, 15
          %v598 = vpop.permute.xlu0 %597
          %599 = vrot.lane.b32.xlu0 %v573, 15
          %v600 = vpop.permute.xlu0 %599
          %601 = vrot.lane.b32.xlu0 %v574, 15
          %v602 = vpop.permute.xlu0 %601
          %603 = vrot.lane.b32.xlu0 %v575, 15
          %v604 = vpop.permute.xlu0 %603
          %605 = vrot.lane.b32.xlu0 %v576, 15
          %v606 = vpop.permute.xlu0 %605
          %607 = vrot.lane.b32.xlu0 %v577, 15
          %v608 = vpop.permute.xlu0 %607
          %609 = vrot.lane.b32.xlu0 %v578, 15
          %v610 = vpop.permute.xlu0 %609
          %611 = vrot.lane.b32.xlu0 %v579, 15
          %v612 = vpop.permute.xlu0 %611
          %613 = vrot.lane.b32.xlu0 %v580, 15
          %v614 = vpop.permute.xlu0 %613
          %615 = vrot.lane.b32.xlu0 %v581, 15
          %v616 = vpop.permute.xlu0 %615
          %617 = vrot.lane.b32.xlu0 %v582, 15
          %v618 = vpop.permute.xlu0 %617
          %vm619 = vcmask 121856
          %v620 = vsel %vm619, %v596, %v598
          %v621 = vsel %vm619, %v598, %v600
          %v622 = vsel %vm619, %v602, %v604
          %v623 = vsel %vm619, %v604, %v606
          %v624 = vsel %vm619, %v608, %v610
          %v625 = vsel %vm619, %v610, %v612
          %v626 = vsel %vm619, %v614, %v616
          %v627 = vsel %vm619, %v616, %v618
          %636 = vst [vmem:[#allocation4 + $0x80] sm:$0xff] %v620
          %637 = vst [vmem:[#allocation4 + $0x88] sm:$0xff] %v621
          %638 = vst [vmem:[#allocation4 + $0x90] sm:$0xff] %v622
          %639 = vst [vmem:[#allocation4 + $0x98] sm:$0xff] %v623
          %640 = vst [vmem:[#allocation4 + $0xa0] sm:$0xff] %v624
          %641 = vst [vmem:[#allocation4 + $0xa8] sm:$0xff] %v625
          %642 = vst [vmem:[#allocation4 + $0xb0] sm:$0xff] %v626
          %643 = vst [vmem:[#allocation4 + $0xb8] sm:$0xff] %v627
          %v644 = vld [vmem:[#allocation2] sm:$0xff]
          %v645 = vld [vmem:[#allocation2 + $0x8] sm:$0xff]
          %v646 = vld [vmem:[#allocation2 + $0x10] sm:$0xff]
          %v647 = vld [vmem:[#allocation2 + $0x20] sm:$0xff]
          %v648 = vld [vmem:[#allocation2 + $0x28] sm:$0xff]
          %v649 = vld [vmem:[#allocation2 + $0x30] sm:$0xff]
          %v650 = vld [vmem:[#allocation2 + $0x40] sm:$0xff]
          %v651 = vld [vmem:[#allocation2 + $0x48] sm:$0xff]
          %v652 = vld [vmem:[#allocation2 + $0x50] sm:$0xff]
          %v653 = vld [vmem:[#allocation2 + $0x60] sm:$0xff]
          %v654 = vld [vmem:[#allocation2 + $0x68] sm:$0xff]
          %v655 = vld [vmem:[#allocation2 + $0x70] sm:$0xff]
          %668 = vrot.lane.b32.xlu0 %v644, 1
          %v669 = vpop.permute.xlu0 %668
          %670 = vrot.lane.b32.xlu0 %v645, 1
          %v671 = vpop.permute.xlu0 %670
          %672 = vrot.lane.b32.xlu0 %v646, 1
          %v673 = vpop.permute.xlu0 %672
          %674 = vrot.lane.b32.xlu0 %v647, 1
          %v675 = vpop.permute.xlu0 %674
          %676 = vrot.lane.b32.xlu0 %v648, 1
          %v677 = vpop.permute.xlu0 %676
          %678 = vrot.lane.b32.xlu0 %v649, 1
          %v679 = vpop.permute.xlu0 %678
          %680 = vrot.lane.b32.xlu0 %v650, 1
          %v681 = vpop.permute.xlu0 %680
          %682 = vrot.lane.b32.xlu0 %v651, 1
          %v683 = vpop.permute.xlu0 %682
          %684 = vrot.lane.b32.xlu0 %v652, 1
          %v685 = vpop.permute.xlu0 %684
          %686 = vrot.lane.b32.xlu0 %v653, 1
          %v687 = vpop.permute.xlu0 %686
          %688 = vrot.lane.b32.xlu0 %v654, 1
          %v689 = vpop.permute.xlu0 %688
          %690 = vrot.lane.b32.xlu0 %v655, 1
          %v691 = vpop.permute.xlu0 %690
          %vm692 = vcmask 7168
          %v693 = vsel %vm692, %v669, %v671
          %v694 = vsel %vm692, %v671, %v673
          %v695 = vsel %vm692, %v675, %v677
          %v696 = vsel %vm692, %v677, %v679
          %v697 = vsel %vm692, %v681, %v683
          %v698 = vsel %vm692, %v683, %v685
          %v699 = vsel %vm692, %v687, %v689
          %v700 = vsel %vm692, %v689, %v691
          %709 = vst [vmem:[#allocation4 + $0xc0] sm:$0xff] %v693
          %710 = vst [vmem:[#allocation4 + $0xc8] sm:$0xff] %v694
          %711 = vst [vmem:[#allocation4 + $0xd0] sm:$0xff] %v695
          %712 = vst [vmem:[#allocation4 + $0xd8] sm:$0xff] %v696
          %713 = vst [vmem:[#allocation4 + $0xe0] sm:$0xff] %v697
          %714 = vst [vmem:[#allocation4 + $0xe8] sm:$0xff] %v698
          %715 = vst [vmem:[#allocation4 + $0xf0] sm:$0xff] %v699
          %716 = vst [vmem:[#allocation4 + $0xf8] sm:$0xff] %v700
          %v717 = vld [vmem:[%s496 + $0x8] sm:$0xff]
          %v718 = vld [vmem:[%s496 + $0x10] sm:$0xff]
          %v719 = vld [vmem:[%s496 + $0x28] sm:$0xff]
          %v720 = vld [vmem:[%s496 + $0x30] sm:$0xff]
          %v721 = vld [vmem:[%s496 + $0x48] sm:$0xff]
          %v722 = vld [vmem:[%s496 + $0x50] sm:$0xff]
          %v723 = vld [vmem:[%s496 + $0x68] sm:$0xff]
          %v724 = vld [vmem:[%s496 + $0x70] sm:$0xff]
          %725 = vst [vmem:[#allocation4 + $0x100] sm:$0xff] %v717
          %726 = vst [vmem:[#allocation4 + $0x108] sm:$0xff] %v718
          %727 = vst [vmem:[#allocation4 + $0x110] sm:$0xff] %v719
          %728 = vst [vmem:[#allocation4 + $0x118] sm:$0xff] %v720
          %729 = vst [vmem:[#allocation4 + $0x120] sm:$0xff] %v721
          %730 = vst [vmem:[#allocation4 + $0x128] sm:$0xff] %v722
          %731 = vst [vmem:[#allocation4 + $0x130] sm:$0xff] %v723
          %732 = vst [vmem:[#allocation4 + $0x138] sm:$0xff] %v724
          %v733 = vld [vmem:[%s570 + $0x8] sm:$0xff]
          %v734 = vld [vmem:[%s570 + $0x10] sm:$0xff]
          %v735 = vld [vmem:[%s570 + $0x18] sm:$0xff]
          %v736 = vld [vmem:[%s570 + $0x28] sm:$0xff]
          %v737 = vld [vmem:[%s570 + $0x30] sm:$0xff]
          %v738 = vld [vmem:[%s570 + $0x38] sm:$0xff]
          %v739 = vld [vmem:[%s570 + $0x48] sm:$0xff]
          %v740 = vld [vmem:[%s570 + $0x50] sm:$0xff]
          %v741 = vld [vmem:[%s570 + $0x58] sm:$0xff]
          %v742 = vld [vmem:[%s570 + $0x68] sm:$0xff]
          %v743 = vld [vmem:[%s570 + $0x70] sm:$0xff]
          %v744 = vld [vmem:[%s570 + $0x78] sm:$0xff]
          %757 = vrot.lane.b32.xlu0 %v733, 127
          %v758 = vpop.permute.xlu0 %757
          %759 = vrot.lane.b32.xlu0 %v734, 127
          %v760 = vpop.permute.xlu0 %759
          %761 = vrot.lane.b32.xlu0 %v735, 127
          %v762 = vpop.permute.xlu0 %761
          %763 = vrot.lane.b32.xlu0 %v736, 127
          %v764 = vpop.permute.xlu0 %763
          %765 = vrot.lane.b32.xlu0 %v737, 127
          %v766 = vpop.permute.xlu0 %765
          %767 = vrot.lane.b32.xlu0 %v738, 127
          %v768 = vpop.permute.xlu0 %767
          %769 = vrot.lane.b32.xlu0 %v739, 127
          %v770 = vpop.permute.xlu0 %769
          %771 = vrot.lane.b32.xlu0 %v740, 127
          %v772 = vpop.permute.xlu0 %771
          %773 = vrot.lane.b32.xlu0 %v741, 127
          %v774 = vpop.permute.xlu0 %773
          %775 = vrot.lane.b32.xlu0 %v742, 127
          %v776 = vpop.permute.xlu0 %775
          %777 = vrot.lane.b32.xlu0 %v743, 127
          %v778 = vpop.permute.xlu0 %777
          %779 = vrot.lane.b32.xlu0 %v744, 127
          %v780 = vpop.permute.xlu0 %779
          %vm781 = vcmask 1039360
          %v782 = vsel %vm781, %v758, %v760
          %v783 = vsel %vm781, %v760, %v762
          %v784 = vsel %vm781, %v764, %v766
          %v785 = vsel %vm781, %v766, %v768
          %v786 = vsel %vm781, %v770, %v772
          %v787 = vsel %vm781, %v772, %v774
          %v788 = vsel %vm781, %v776, %v778
          %v789 = vsel %vm781, %v778, %v780
          %798 = vst [vmem:[#allocation4 + $0x140] sm:$0xff] %v782
          %799 = vst [vmem:[#allocation4 + $0x148] sm:$0xff] %v783
          %800 = vst [vmem:[#allocation4 + $0x150] sm:$0xff] %v784
          %801 = vst [vmem:[#allocation4 + $0x158] sm:$0xff] %v785
          %802 = vst [vmem:[#allocation4 + $0x160] sm:$0xff] %v786
          %803 = vst [vmem:[#allocation4 + $0x168] sm:$0xff] %v787
          %804 = vst [vmem:[#allocation4 + $0x170] sm:$0xff] %v788
          %805 = vst [vmem:[#allocation4 + $0x178] sm:$0xff] %v789
          %v806 = vld [vmem:[#allocation2 + $0x8] sm:$0xff]
          %v807 = vld [vmem:[#allocation2 + $0x10] sm:$0xff]
          %v808 = vld [vmem:[#allocation2 + $0x18] sm:$0xff]
          %v809 = vld [vmem:[#allocation2 + $0x28] sm:$0xff]
          %v810 = vld [vmem:[#allocation2 + $0x30] sm:$0xff]
          %v811 = vld [vmem:[#allocation2 + $0x38] sm:$0xff]
          %v812 = vld [vmem:[#allocation2 + $0x48] sm:$0xff]
          %v813 = vld [vmem:[#allocation2 + $0x50] sm:$0xff]
          %v814 = vld [vmem:[#allocation2 + $0x58] sm:$0xff]
          %v815 = vld [vmem:[#allocation2 + $0x68] sm:$0xff]
          %v816 = vld [vmem:[#allocation2 + $0x70] sm:$0xff]
          %v817 = vld [vmem:[#allocation2 + $0x78] sm:$0xff]
          %830 = vrot.lane.b32.xlu0 %v806, 113
          %v831 = vpop.permute.xlu0 %830
          %832 = vrot.lane.b32.xlu0 %v807, 113
          %v833 = vpop.permute.xlu0 %832
          %834 = vrot.lane.b32.xlu0 %v808, 113
          %v835 = vpop.permute.xlu0 %834
          %836 = vrot.lane.b32.xlu0 %v809, 113
          %v837 = vpop.permute.xlu0 %836
          %838 = vrot.lane.b32.xlu0 %v810, 113
          %v839 = vpop.permute.xlu0 %838
          %840 = vrot.lane.b32.xlu0 %v811, 113
          %v841 = vpop.permute.xlu0 %840
          %842 = vrot.lane.b32.xlu0 %v812, 113
          %v843 = vpop.permute.xlu0 %842
          %844 = vrot.lane.b32.xlu0 %v813, 113
          %v845 = vpop.permute.xlu0 %844
          %846 = vrot.lane.b32.xlu0 %v814, 113
          %v847 = vpop.permute.xlu0 %846
          %848 = vrot.lane.b32.xlu0 %v815, 113
          %v849 = vpop.permute.xlu0 %848
          %850 = vrot.lane.b32.xlu0 %v816, 113
          %v851 = vpop.permute.xlu0 %850
          %852 = vrot.lane.b32.xlu0 %v817, 113
          %v853 = vpop.permute.xlu0 %852
          %vm854 = vcmask 924672
          %v855 = vsel %vm854, %v831, %v833
          %v856 = vsel %vm854, %v833, %v835
          %v857 = vsel %vm854, %v837, %v839
          %v858 = vsel %vm854, %v839, %v841
          %v859 = vsel %vm854, %v843, %v845
          %v860 = vsel %vm854, %v845, %v847
          %v861 = vsel %vm854, %v849, %v851
          %v862 = vsel %vm854, %v851, %v853
          %871 = vst [vmem:[#allocation4 + $0x180] sm:$0xff] %v855
          %872 = vst [vmem:[#allocation4 + $0x188] sm:$0xff] %v856
          %873 = vst [vmem:[#allocation4 + $0x190] sm:$0xff] %v857
          %874 = vst [vmem:[#allocation4 + $0x198] sm:$0xff] %v858
          %875 = vst [vmem:[#allocation4 + $0x1a0] sm:$0xff] %v859
          %876 = vst [vmem:[#allocation4 + $0x1a8] sm:$0xff] %v860
          %877 = vst [vmem:[#allocation4 + $0x1b0] sm:$0xff] %v861
          %878 = vst [vmem:[#allocation4 + $0x1b8] sm:$0xff] %v862
          %v879 = vld [vmem:[%s496 + $0x8] sm:$0xff]
          %v880 = vld [vmem:[%s496 + $0x10] sm:$0xff]
          %v881 = vld [vmem:[%s496 + $0x18] sm:$0xff]
          %v882 = vld [vmem:[%s496 + $0x28] sm:$0xff]
          %v883 = vld [vmem:[%s496 + $0x30] sm:$0xff]
          %v884 = vld [vmem:[%s496 + $0x38] sm:$0xff]
          %v885 = vld [vmem:[%s496 + $0x48] sm:$0xff]
          %v886 = vld [vmem:[%s496 + $0x50] sm:$0xff]
          %v887 = vld [vmem:[%s496 + $0x58] sm:$0xff]
          %v888 = vld [vmem:[%s496 + $0x68] sm:$0xff]
          %v889 = vld [vmem:[%s496 + $0x70] sm:$0xff]
          %v890 = vld [vmem:[%s496 + $0x78] sm:$0xff]
          %903 = vrot.lane.b32.xlu0 %v879, 112
          %v904 = vpop.permute.xlu0 %903
          %905 = vrot.lane.b32.xlu0 %v880, 112
          %v906 = vpop.permute.xlu0 %905
          %907 = vrot.lane.b32.xlu0 %v881, 112
          %v908 = vpop.permute.xlu0 %907
          %909 = vrot.lane.b32.xlu0 %v882, 112
          %v910 = vpop.permute.xlu0 %909
          %911 = vrot.lane.b32.xlu0 %v883, 112
          %v912 = vpop.permute.xlu0 %911
          %913 = vrot.lane.b32.xlu0 %v884, 112
          %v914 = vpop.permute.xlu0 %913
          %915 = vrot.lane.b32.xlu0 %v885, 112
          %v916 = vpop.permute.xlu0 %915
          %917 = vrot.lane.b32.xlu0 %v886, 112
          %v918 = vpop.permute.xlu0 %917
          %919 = vrot.lane.b32.xlu0 %v887, 112
          %v920 = vpop.permute.xlu0 %919
          %921 = vrot.lane.b32.xlu0 %v888, 112
          %v922 = vpop.permute.xlu0 %921
          %923 = vrot.lane.b32.xlu0 %v889, 112
          %v924 = vpop.permute.xlu0 %923
          %925 = vrot.lane.b32.xlu0 %v890, 112
          %v926 = vpop.permute.xlu0 %925
          %vm927 = vcmask 916480
          %v928 = vsel %vm927, %v904, %v906
          %v929 = vsel %vm927, %v906, %v908
          %v930 = vsel %vm927, %v910, %v912
          %v931 = vsel %vm927, %v912, %v914
          %v932 = vsel %vm927, %v916, %v918
          %v933 = vsel %vm927, %v918, %v920
          %v934 = vsel %vm927, %v922, %v924
          %v935 = vsel %vm927, %v924, %v926
          %944 = vst [vmem:[#allocation4 + $0x1c0] sm:$0xff] %v928
          %945 = vst [vmem:[#allocation4 + $0x1c8] sm:$0xff] %v929
          %946 = vst [vmem:[#allocation4 + $0x1d0] sm:$0xff] %v930
          %947 = vst [vmem:[#allocation4 + $0x1d8] sm:$0xff] %v931
          %948 = vst [vmem:[#allocation4 + $0x1e0] sm:$0xff] %v932
          %949 = vst [vmem:[#allocation4 + $0x1e8] sm:$0xff] %v933
          %950 = vst [vmem:[#allocation4 + $0x1f0] sm:$0xff] %v934
          %951 = vst [vmem:[#allocation4 + $0x1f8] sm:$0xff] %v935
          %v952 = vld [vmem:[%s570 + $0x8] sm:$0xff]
          %v953 = vld [vmem:[%s570 + $0x10] sm:$0xff]
          %v954 = vld [vmem:[%s570 + $0x18] sm:$0xff]
          %v955 = vld [vmem:[%s570 + $0x28] sm:$0xff]
          %v956 = vld [vmem:[%s570 + $0x30] sm:$0xff]
          %v957 = vld [vmem:[%s570 + $0x38] sm:$0xff]
          %v958 = vld [vmem:[%s570 + $0x48] sm:$0xff]
          %v959 = vld [vmem:[%s570 + $0x50] sm:$0xff]
          %v960 = vld [vmem:[%s570 + $0x58] sm:$0xff]
          %v961 = vld [vmem:[%s570 + $0x68] sm:$0xff]
          %v962 = vld [vmem:[%s570 + $0x70] sm:$0xff]
          %v963 = vld [vmem:[%s570 + $0x78] sm:$0xff]
          %976 = vrot.lane.b32.xlu0 %v952, 111
          %v977 = vpop.permute.xlu0 %976
          %978 = vrot.lane.b32.xlu0 %v953, 111
          %v979 = vpop.permute.xlu0 %978
          %980 = vrot.lane.b32.xlu0 %v954, 111
          %v981 = vpop.permute.xlu0 %980
          %982 = vrot.lane.b32.xlu0 %v955, 111
          %v983 = vpop.permute.xlu0 %982
          %984 = vrot.lane.b32.xlu0 %v956, 111
          %v985 = vpop.permute.xlu0 %984
          %986 = vrot.lane.b32.xlu0 %v957, 111
          %v987 = vpop.permute.xlu0 %986
          %988 = vrot.lane.b32.xlu0 %v958, 111
          %v989 = vpop.permute.xlu0 %988
          %990 = vrot.lane.b32.xlu0 %v959, 111
          %v991 = vpop.permute.xlu0 %990
          %992 = vrot.lane.b32.xlu0 %v960, 111
          %v993 = vpop.permute.xlu0 %992
          %994 = vrot.lane.b32.xlu0 %v961, 111
          %v995 = vpop.permute.xlu0 %994
          %996 = vrot.lane.b32.xlu0 %v962, 111
          %v997 = vpop.permute.xlu0 %996
          %998 = vrot.lane.b32.xlu0 %v963, 111
          %v999 = vpop.permute.xlu0 %998
          %vm1000 = vcmask 908288
          %v1001 = vsel %vm1000, %v977, %v979
          %v1002 = vsel %vm1000, %v979, %v981
          %v1003 = vsel %vm1000, %v983, %v985
          %v1004 = vsel %vm1000, %v985, %v987
          %v1005 = vsel %vm1000, %v989, %v991
          %v1006 = vsel %vm1000, %v991, %v993
          %v1007 = vsel %vm1000, %v995, %v997
          %v1008 = vsel %vm1000, %v997, %v999
          %1017 = vst [vmem:[#allocation4 + $0x200] sm:$0xff] %v1001
          %1018 = vst [vmem:[#allocation4 + $0x208] sm:$0xff] %v1002
          %1019 = vst [vmem:[#allocation4 + $0x210] sm:$0xff] %v1003
          %1020 = vst [vmem:[#allocation4 + $0x218] sm:$0xff] %v1004
          %1021 = vst [vmem:[#allocation4 + $0x220] sm:$0xff] %v1005
          %1022 = vst [vmem:[#allocation4 + $0x228] sm:$0xff] %v1006
          %1023 = vst [vmem:[#allocation4 + $0x230] sm:$0xff] %v1007
          %1024 = vst [vmem:[#allocation4 + $0x238] sm:$0xff] %v1008
          %v1025 = vld [vmem:[%s1] sm:$0xff]
          %v1026 = vld [vmem:[%s1 + $0x8] sm:$0xff]
          %v1027 = vld [vmem:[%s1 + $0x10] sm:$0xff]
          %v1028 = vld [vmem:[%s1 + $0x18] sm:$0xff]
          %v1029 = vld [vmem:[%s1 + $0x20] sm:$0xff]
          %v1030 = vld [vmem:[%s1 + $0x28] sm:$0xff]
          %v1031 = vld [vmem:[%s1 + $0x30] sm:$0xff]
          %v1032 = vld [vmem:[%s1 + $0x38] sm:$0xff]
          %v1033 = vld [vmem:[%s1 + $0x40] sm:$0xff]
          %v1034 = vld [vmem:[%s1 + $0x48] sm:$0xff]
          %v1035 = vld [vmem:[%s1 + $0x50] sm:$0xff]
          %v1036 = vld [vmem:[%s1 + $0x58] sm:$0xff]
          %v1037 = vld [vmem:[%s1 + $0x60] sm:$0xff]
          %v1038 = vld [vmem:[%s1 + $0x68] sm:$0xff]
          %v1039 = vld [vmem:[%s1 + $0x70] sm:$0xff]
          %v1040 = vld [vmem:[%s1 + $0x78] sm:$0xff]
          %v1041 = vld [vmem:[%s1 + $0x80] sm:$0xff]
          %v1042 = vld [vmem:[%s1 + $0x88] sm:$0xff]
          %v1043 = vld [vmem:[%s1 + $0x90] sm:$0xff]
          %v1044 = vld [vmem:[%s1 + $0x98] sm:$0xff]
          %v1045 = vld [vmem:[%s1 + $0xa0] sm:$0xff]
          %v1046 = vld [vmem:[%s1 + $0xa8] sm:$0xff]
          %v1047 = vld [vmem:[%s1 + $0xb0] sm:$0xff]
          %v1048 = vld [vmem:[%s1 + $0xb8] sm:$0xff]
          %v1049 = vld [vmem:[%s1 + $0xc0] sm:$0xff]
          %v1050 = vld [vmem:[%s1 + $0xc8] sm:$0xff]
          %v1051 = vld [vmem:[%s1 + $0xd0] sm:$0xff]
          %v1052 = vld [vmem:[%s1 + $0xd8] sm:$0xff]
          %v1053 = vld [vmem:[%s1 + $0xe0] sm:$0xff]
          %v1054 = vld [vmem:[%s1 + $0xe8] sm:$0xff]
          %v1055 = vld [vmem:[%s1 + $0xf0] sm:$0xff]
          %v1056 = vld [vmem:[%s1 + $0xf8] sm:$0xff]
          %v1057 = vld [vmem:[%s1 + $0x100] sm:$0xff]
          %v1058 = vld [vmem:[%s1 + $0x108] sm:$0xff]
          %v1059 = vld [vmem:[%s1 + $0x110] sm:$0xff]
          %v1060 = vld [vmem:[%s1 + $0x118] sm:$0xff]
          %v1061 = vld [vmem:[%s1 + $0x120] sm:$0xff]
          %v1062 = vld [vmem:[%s1 + $0x128] sm:$0xff]
          %v1063 = vld [vmem:[%s1 + $0x130] sm:$0xff]
          %v1064 = vld [vmem:[%s1 + $0x138] sm:$0xff]
          %v1065 = vld [vmem:[%s1 + $0x140] sm:$0xff]
          %v1066 = vld [vmem:[%s1 + $0x148] sm:$0xff]
          %v1067 = vld [vmem:[%s1 + $0x150] sm:$0xff]
          %v1068 = vld [vmem:[%s1 + $0x158] sm:$0xff]
          %v1069 = vld [vmem:[%s1 + $0x160] sm:$0xff]
          %v1070 = vld [vmem:[%s1 + $0x168] sm:$0xff]
          %v1071 = vld [vmem:[%s1 + $0x170] sm:$0xff]
          %v1072 = vld [vmem:[%s1 + $0x178] sm:$0xff]
          %v1073 = vld [vmem:[#allocation4] sm:$0xff]
          %v1074 = vld [vmem:[#allocation4 + $0x8] sm:$0xff]
          %v1075 = vld [vmem:[#allocation4 + $0x10] sm:$0xff]
          %v1076 = vld [vmem:[#allocation4 + $0x18] sm:$0xff]
          %v1077 = vld [vmem:[#allocation4 + $0x20] sm:$0xff]
          %v1078 = vld [vmem:[#allocation4 + $0x28] sm:$0xff]
          %v1079 = vld [vmem:[#allocation4 + $0x30] sm:$0xff]
          %v1080 = vld [vmem:[#allocation4 + $0x38] sm:$0xff]
          %v1081 = vld [vmem:[#allocation4 + $0x40] sm:$0xff]
          %v1082 = vld [vmem:[#allocation4 + $0x48] sm:$0xff]
          %v1083 = vld [vmem:[#allocation4 + $0x50] sm:$0xff]
          %v1084 = vld [vmem:[#allocation4 + $0x58] sm:$0xff]
          %v1085 = vld [vmem:[#allocation4 + $0x60] sm:$0xff]
          %v1086 = vld [vmem:[#allocation4 + $0x68] sm:$0xff]
          %v1087 = vld [vmem:[#allocation4 + $0x70] sm:$0xff]
          %v1088 = vld [vmem:[#allocation4 + $0x78] sm:$0xff]
          %v1089 = vld [vmem:[#allocation4 + $0x80] sm:$0xff]
          %v1090 = vld [vmem:[#allocation4 + $0x88] sm:$0xff]
          %v1091 = vld [vmem:[#allocation4 + $0x90] sm:$0xff]
          %v1092 = vld [vmem:[#allocation4 + $0x98] sm:$0xff]
          %v1093 = vld [vmem:[#allocation4 + $0xa0] sm:$0xff]
          %v1094 = vld [vmem:[#allocation4 + $0xa8] sm:$0xff]
          %v1095 = vld [vmem:[#allocation4 + $0xb0] sm:$0xff]
          %v1096 = vld [vmem:[#allocation4 + $0xb8] sm:$0xff]
          %v1097 = vld [vmem:[#allocation4 + $0xc0] sm:$0xff]
          %v1098 = vld [vmem:[#allocation4 + $0xc8] sm:$0xff]
          %v1099 = vld [vmem:[#allocation4 + $0xd0] sm:$0xff]
          %v1100 = vld [vmem:[#allocation4 + $0xd8] sm:$0xff]
          %v1101 = vld [vmem:[#allocation4 + $0xe0] sm:$0xff]
          %v1102 = vld [vmem:[#allocation4 + $0xe8] sm:$0xff]
          %v1103 = vld [vmem:[#allocation4 + $0xf0] sm:$0xff]
          %v1104 = vld [vmem:[#allocation4 + $0xf8] sm:$0xff]
          %v1105 = vld [vmem:[#allocation4 + $0x100] sm:$0xff]
          %v1106 = vld [vmem:[#allocation4 + $0x108] sm:$0xff]
          %v1107 = vld [vmem:[#allocation4 + $0x110] sm:$0xff]
          %v1108 = vld [vmem:[#allocation4 + $0x118] sm:$0xff]
          %v1109 = vld [vmem:[#allocation4 + $0x120] sm:$0xff]
          %v1110 = vld [vmem:[#allocation4 + $0x128] sm:$0xff]
          %v1111 = vld [vmem:[#allocation4 + $0x130] sm:$0xff]
          %v1112 = vld [vmem:[#allocation4 + $0x138] sm:$0xff]
          %v1113 = vld [vmem:[#allocation4 + $0x140] sm:$0xff]
          %v1114 = vld [vmem:[#allocation4 + $0x148] sm:$0xff]
          %v1115 = vld [vmem:[#allocation4 + $0x150] sm:$0xff]
          %v1116 = vld [vmem:[#allocation4 + $0x158] sm:$0xff]
          %v1117 = vld [vmem:[#allocation4 + $0x160] sm:$0xff]
          %v1118 = vld [vmem:[#allocation4 + $0x168] sm:$0xff]
          %v1119 = vld [vmem:[#allocation4 + $0x170] sm:$0xff]
          %v1120 = vld [vmem:[#allocation4 + $0x178] sm:$0xff]
          %v1121 = vld [vmem:[#allocation4 + $0x180] sm:$0xff]
          %v1122 = vld [vmem:[#allocation4 + $0x188] sm:$0xff]
          %v1123 = vld [vmem:[#allocation4 + $0x190] sm:$0xff]
          %v1124 = vld [vmem:[#allocation4 + $0x198] sm:$0xff]
          %v1125 = vld [vmem:[#allocation4 + $0x1a0] sm:$0xff]
          %v1126 = vld [vmem:[#allocation4 + $0x1a8] sm:$0xff]
          %v1127 = vld [vmem:[#allocation4 + $0x1b0] sm:$0xff]
          %v1128 = vld [vmem:[#allocation4 + $0x1b8] sm:$0xff]
          %v1129 = vld [vmem:[#allocation4 + $0x1c0] sm:$0xff]
          %v1130 = vld [vmem:[#allocation4 + $0x1c8] sm:$0xff]
          %v1131 = vld [vmem:[#allocation4 + $0x1d0] sm:$0xff]
          %v1132 = vld [vmem:[#allocation4 + $0x1d8] sm:$0xff]
          %v1133 = vld [vmem:[#allocation4 + $0x1e0] sm:$0xff]
          %v1134 = vld [vmem:[#allocation4 + $0x1e8] sm:$0xff]
          %v1135 = vld [vmem:[#allocation4 + $0x1f0] sm:$0xff]
          %v1136 = vld [vmem:[#allocation4 + $0x1f8] sm:$0xff]
          %v1137 = vld [vmem:[#allocation4 + $0x200] sm:$0xff]
          %v1138 = vld [vmem:[#allocation4 + $0x208] sm:$0xff]
          %v1139 = vld [vmem:[#allocation4 + $0x210] sm:$0xff]
          %v1140 = vld [vmem:[#allocation4 + $0x218] sm:$0xff]
          %v1141 = vld [vmem:[#allocation4 + $0x220] sm:$0xff]
          %v1142 = vld [vmem:[#allocation4 + $0x228] sm:$0xff]
          %v1143 = vld [vmem:[#allocation4 + $0x230] sm:$0xff]
          %v1144 = vld [vmem:[#allocation4 + $0x238] sm:$0xff]
          %vm1145 = vcmask 261120
          %v1147 = vsel %vm1145, %v1027, 0
          %v1150 = vsel %vm1145, %v1030, 0
          %v1153 = vsel %vm1145, %v1033, 0
          %v1156 = vsel %vm1145, %v1036, 0
          %v1159 = vsel %vm1145, %v1039, 0
          %v1162 = vsel %vm1145, %v1042, 0
          %v1165 = vsel %vm1145, %v1045, 0
          %v1168 = vsel %vm1145, %v1048, 0
          %v1171 = vsel %vm1145, %v1051, 0
          %v1174 = vsel %vm1145, %v1054, 0
          %v1177 = vsel %vm1145, %v1057, 0
          %v1180 = vsel %vm1145, %v1060, 0
          %v1183 = vsel %vm1145, %v1063, 0
          %v1186 = vsel %vm1145, %v1066, 0
          %v1189 = vsel %vm1145, %v1069, 0
          %v1192 = vsel %vm1145, %v1072, 0
          %1194 = vmatpush.msra.mxu0 %v1103
          %1195 = vmatpush.msra.mxu0 %v1101
          %1196 = vmatpush.msra.mxu0 %v1099
          %1197 = vmatpush.msra.mxu0 %v1097
          %1198 = vmatpush.msra.mxu0 %v1095
          %1199 = vmatpush.msra.mxu0 %v1093
          %1200 = vmatpush.msra.mxu0 %v1091
          %1201 = vmatpush.msra.mxu0 %v1089
          %1202 = vmatpush.msra.mxu0 %v1087
          %1203 = vmatpush.msra.mxu0 %v1085
          %1204 = vmatpush.msra.mxu0 %v1083
          %1205 = vmatpush.msra.mxu0 %v1081
          %1206 = vmatpush.msra.mxu0 %v1079
          %1207 = vmatpush.msra.mxu0 %v1077
          %1208 = vmatpush.msra.mxu0 %v1075
          %1209 = vmatpush.msra.mxu0 %v1073
          %1210 = vmatmul.f32.gmra.mxu0 %v1025
          %v1211 = vpop.f32.mrf.mxu0
          %v1212 = vadd.f32 0.0, %v1211
          %1213 = vmatmul.f32.gmra.mxu0 %v1028
          %v1214 = vpop.f32.mrf.mxu0
          %v1215 = vadd.f32 0.0, %v1214
          %1216 = vmatmul.f32.gmra.mxu0 %v1031
          %v1217 = vpop.f32.mrf.mxu0
          %v1218 = vadd.f32 0.0, %v1217
          %1219 = vmatmul.f32.gmra.mxu0 %v1034
          %v1220 = vpop.f32.mrf.mxu0
          %v1221 = vadd.f32 0.0, %v1220
          %1222 = vmatmul.f32.gmra.mxu0 %v1037
          %v1223 = vpop.f32.mrf.mxu0
          %v1224 = vadd.f32 0.0, %v1223
          %1225 = vmatmul.f32.gmra.mxu0 %v1040
          %v1226 = vpop.f32.mrf.mxu0
          %v1227 = vadd.f32 0.0, %v1226
          %1228 = vmatmul.f32.gmra.mxu0 %v1043
          %v1229 = vpop.f32.mrf.mxu0
          %v1230 = vadd.f32 0.0, %v1229
          %1231 = vmatmul.f32.gmra.mxu0 %v1046
          %v1232 = vpop.f32.mrf.mxu0
          %v1233 = vadd.f32 0.0, %v1232
          %1234 = vmatmul.f32.gmra.mxu0 %v1049
          %v1235 = vpop.f32.mrf.mxu0
          %v1236 = vadd.f32 0.0, %v1235
          %1237 = vmatmul.f32.gmra.mxu0 %v1052
          %v1238 = vpop.f32.mrf.mxu0
          %v1239 = vadd.f32 0.0, %v1238
          %1240 = vmatmul.f32.gmra.mxu0 %v1055
          %v1241 = vpop.f32.mrf.mxu0
          %v1242 = vadd.f32 0.0, %v1241
          %1243 = vmatmul.f32.gmra.mxu0 %v1058
          %v1244 = vpop.f32.mrf.mxu0
          %v1245 = vadd.f32 0.0, %v1244
          %1246 = vmatmul.f32.gmra.mxu0 %v1061
          %v1247 = vpop.f32.mrf.mxu0
          %v1248 = vadd.f32 0.0, %v1247
          %1249 = vmatmul.f32.gmra.mxu0 %v1064
          %v1250 = vpop.f32.mrf.mxu0
          %v1251 = vadd.f32 0.0, %v1250
          %1252 = vmatmul.f32.gmra.mxu0 %v1067
          %v1253 = vpop.f32.mrf.mxu0
          %v1254 = vadd.f32 0.0, %v1253
          %1255 = vmatmul.f32.gmra.mxu0 %v1070
          %v1256 = vpop.f32.mrf.mxu0
          %v1257 = vadd.f32 0.0, %v1256
          %1258 = vdwg.mxu0
          %1259 = vmatpush.msra.mxu0 %v1135
          %1260 = vmatpush.msra.mxu0 %v1133
          %1261 = vmatpush.msra.mxu0 %v1131
          %1262 = vmatpush.msra.mxu0 %v1129
          %1263 = vmatpush.msra.mxu0 %v1127
          %1264 = vmatpush.msra.mxu0 %v1125
          %1265 = vmatpush.msra.mxu0 %v1123
          %1266 = vmatpush.msra.mxu0 %v1121
          %1267 = vmatpush.msra.mxu0 %v1119
          %1268 = vmatpush.msra.mxu0 %v1117
          %1269 = vmatpush.msra.mxu0 %v1115
          %1270 = vmatpush.msra.mxu0 %v1113
          %1271 = vmatpush.msra.mxu0 %v1111
          %1272 = vmatpush.msra.mxu0 %v1109
          %1273 = vmatpush.msra.mxu0 %v1107
          %1274 = vmatpush.msra.mxu0 %v1105
          %1275 = vmatmul.f32.gmra.mxu0 %v1026
          %v1276 = vpop.f32.mrf.mxu0
          %v1277 = vadd.f32 %v1212, %v1276
          %1278 = vmatmul.f32.gmra.mxu0 %v1029
          %v1279 = vpop.f32.mrf.mxu0
          %v1280 = vadd.f32 %v1215, %v1279
          %1281 = vmatmul.f32.gmra.mxu0 %v1032
          %v1282 = vpop.f32.mrf.mxu0
          %v1283 = vadd.f32 %v1218, %v1282
          %1284 = vmatmul.f32.gmra.mxu0 %v1035
          %v1285 = vpop.f32.mrf.mxu0
          %v1286 = vadd.f32 %v1221, %v1285
          %1287 = vmatmul.f32.gmra.mxu0 %v1038
          %v1288 = vpop.f32.mrf.mxu0
          %v1289 = vadd.f32 %v1224, %v1288
          %1290 = vmatmul.f32.gmra.mxu0 %v1041
          %v1291 = vpop.f32.mrf.mxu0
          %v1292 = vadd.f32 %v1227, %v1291
          %1293 = vmatmul.f32.gmra.mxu0 %v1044
          %v1294 = vpop.f32.mrf.mxu0
          %v1295 = vadd.f32 %v1230, %v1294
          %1296 = vmatmul.f32.gmra.mxu0 %v1047
          %v1297 = vpop.f32.mrf.mxu0
          %v1298 = vadd.f32 %v1233, %v1297
          %1299 = vmatmul.f32.gmra.mxu0 %v1050
          %v1300 = vpop.f32.mrf.mxu0
          %v1301 = vadd.f32 %v1236, %v1300
          %1302 = vmatmul.f32.gmra.mxu0 %v1053
          %v1303 = vpop.f32.mrf.mxu0
          %v1304 = vadd.f32 %v1239, %v1303
          %1305 = vmatmul.f32.gmra.mxu0 %v1056
          %v1306 = vpop.f32.mrf.mxu0
          %v1307 = vadd.f32 %v1242, %v1306
          %1308 = vmatmul.f32.gmra.mxu0 %v1059
          %v1309 = vpop.f32.mrf.mxu0
          %v1310 = vadd.f32 %v1245, %v1309
          %1311 = vmatmul.f32.gmra.mxu0 %v1062
          %v1312 = vpop.f32.mrf.mxu0
          %v1313 = vadd.f32 %v1248, %v1312
          %1314 = vmatmul.f32.gmra.mxu0 %v1065
          %v1315 = vpop.f32.mrf.mxu0
          %v1316 = vadd.f32 %v1251, %v1315
          %1317 = vmatmul.f32.gmra.mxu0 %v1068
          %v1318 = vpop.f32.mrf.mxu0
          %v1319 = vadd.f32 %v1254, %v1318
          %1320 = vmatmul.f32.gmra.mxu0 %v1071
          %v1321 = vpop.f32.mrf.mxu0
          %v1322 = vadd.f32 %v1257, %v1321
          %1323 = vdwg.mxu0
          %1324 = vmatpush.msra.mxu0 0.0
          %1325 = vmatpush.msra.mxu0 0.0
          %1326 = vmatpush.msra.mxu0 0.0
          %1327 = vmatpush.msra.mxu0 0.0
          %1328 = vmatpush.msra.mxu0 0.0
          %1329 = vmatpush.msra.mxu0 0.0
          %1330 = vmatpush.msra.mxu0 0.0
          %1331 = vmatpush.msra.mxu0 0.0
          %1332 = vmatpush.msra.mxu0 0.0
          %1333 = vmatpush.msra.mxu0 0.0
          %1334 = vmatpush.msra.mxu0 0.0
          %1335 = vmatpush.msra.mxu0 0.0
          %1336 = vmatpush.msra.mxu0 %v1143
          %1337 = vmatpush.msra.mxu0 %v1141
          %1338 = vmatpush.msra.mxu0 %v1139
          %1339 = vmatpush.msra.mxu0 %v1137
          %1340 = vmatmul.f32.gmra.mxu0 %v1147
          %v1341 = vpop.f32.mrf.mxu0
          %v1342 = vadd.f32 %v1277, %v1341
          %1343 = vmatmul.f32.gmra.mxu0 %v1150
          %v1344 = vpop.f32.mrf.mxu0
          %v1345 = vadd.f32 %v1280, %v1344
          %1346 = vmatmul.f32.gmra.mxu0 %v1153
          %v1347 = vpop.f32.mrf.mxu0
          %v1348 = vadd.f32 %v1283, %v1347
          %1349 = vmatmul.f32.gmra.mxu0 %v1156
          %v1350 = vpop.f32.mrf.mxu0
          %v1351 = vadd.f32 %v1286, %v1350
          %1352 = vmatmul.f32.gmra.mxu0 %v1159
          %v1353 = vpop.f32.mrf.mxu0
          %v1354 = vadd.f32 %v1289, %v1353
          %1355 = vmatmul.f32.gmra.mxu0 %v1162
          %v1356 = vpop.f32.mrf.mxu0
          %v1357 = vadd.f32 %v1292, %v1356
          %1358 = vmatmul.f32.gmra.mxu0 %v1165
          %v1359 = vpop.f32.mrf.mxu0
          %v1360 = vadd.f32 %v1295, %v1359
          %1361 = vmatmul.f32.gmra.mxu0 %v1168
          %v1362 = vpop.f32.mrf.mxu0
          %v1363 = vadd.f32 %v1298, %v1362
          %1364 = vmatmul.f32.gmra.mxu0 %v1171
          %v1365 = vpop.f32.mrf.mxu0
          %v1366 = vadd.f32 %v1301, %v1365
          %1367 = vmatmul.f32.gmra.mxu0 %v1174
          %v1368 = vpop.f32.mrf.mxu0
          %v1369 = vadd.f32 %v1304, %v1368
          %1370 = vmatmul.f32.gmra.mxu0 %v1177
          %v1371 = vpop.f32.mrf.mxu0
          %v1372 = vadd.f32 %v1307, %v1371
          %1373 = vmatmul.f32.gmra.mxu0 %v1180
          %v1374 = vpop.f32.mrf.mxu0
          %v1375 = vadd.f32 %v1310, %v1374
          %1376 = vmatmul.f32.gmra.mxu0 %v1183
          %v1377 = vpop.f32.mrf.mxu0
          %v1378 = vadd.f32 %v1313, %v1377
          %1379 = vmatmul.f32.gmra.mxu0 %v1186
          %v1380 = vpop.f32.mrf.mxu0
          %v1381 = vadd.f32 %v1316, %v1380
          %1382 = vmatmul.f32.gmra.mxu0 %v1189
          %v1383 = vpop.f32.mrf.mxu0
          %v1384 = vadd.f32 %v1319, %v1383
          %1385 = vmatmul.f32.gmra.mxu0 %v1192
          %v1386 = vpop.f32.mrf.mxu0
          %v1387 = vadd.f32 %v1322, %v1386
          %1388 = vdwg.mxu0
          %1389 = vmatpush.msra.mxu0 %v1104
          %1390 = vmatpush.msra.mxu0 %v1102
          %1391 = vmatpush.msra.mxu0 %v1100
          %1392 = vmatpush.msra.mxu0 %v1098
          %1393 = vmatpush.msra.mxu0 %v1096
          %1394 = vmatpush.msra.mxu0 %v1094
          %1395 = vmatpush.msra.mxu0 %v1092
          %1396 = vmatpush.msra.mxu0 %v1090
          %1397 = vmatpush.msra.mxu0 %v1088
          %1398 = vmatpush.msra.mxu0 %v1086
          %1399 = vmatpush.msra.mxu0 %v1084
          %1400 = vmatpush.msra.mxu0 %v1082
          %1401 = vmatpush.msra.mxu0 %v1080
          %1402 = vmatpush.msra.mxu0 %v1078
          %1403 = vmatpush.msra.mxu0 %v1076
          %1404 = vmatpush.msra.mxu0 %v1074
          %1405 = vmatmul.f32.gmra.mxu0 %v1025
          %v1406 = vpop.f32.mrf.mxu0
          %v1407 = vadd.f32 0.0, %v1406
          %1408 = vmatmul.f32.gmra.mxu0 %v1028
          %v1409 = vpop.f32.mrf.mxu0
          %v1410 = vadd.f32 0.0, %v1409
          %1411 = vmatmul.f32.gmra.mxu0 %v1031
          %v1412 = vpop.f32.mrf.mxu0
          %v1413 = vadd.f32 0.0, %v1412
          %1414 = vmatmul.f32.gmra.mxu0 %v1034
          %v1415 = vpop.f32.mrf.mxu0
          %v1416 = vadd.f32 0.0, %v1415
          %1417 = vmatmul.f32.gmra.mxu0 %v1037
          %v1418 = vpop.f32.mrf.mxu0
          %v1419 = vadd.f32 0.0, %v1418
          %1420 = vmatmul.f32.gmra.mxu0 %v1040
          %v1421 = vpop.f32.mrf.mxu0
          %v1422 = vadd.f32 0.0, %v1421
          %1423 = vmatmul.f32.gmra.mxu0 %v1043
          %v1424 = vpop.f32.mrf.mxu0
          %v1425 = vadd.f32 0.0, %v1424
          %1426 = vmatmul.f32.gmra.mxu0 %v1046
          %v1427 = vpop.f32.mrf.mxu0
          %v1428 = vadd.f32 0.0, %v1427
          %1429 = vmatmul.f32.gmra.mxu0 %v1049
          %v1430 = vpop.f32.mrf.mxu0
          %v1431 = vadd.f32 0.0, %v1430
          %1432 = vmatmul.f32.gmra.mxu0 %v1052
          %v1433 = vpop.f32.mrf.mxu0
          %v1434 = vadd.f32 0.0, %v1433
          %1435 = vmatmul.f32.gmra.mxu0 %v1055
          %v1436 = vpop.f32.mrf.mxu0
          %v1437 = vadd.f32 0.0, %v1436
          %1438 = vmatmul.f32.gmra.mxu0 %v1058
          %v1439 = vpop.f32.mrf.mxu0
          %v1440 = vadd.f32 0.0, %v1439
          %1441 = vmatmul.f32.gmra.mxu0 %v1061
          %v1442 = vpop.f32.mrf.mxu0
          %v1443 = vadd.f32 0.0, %v1442
          %1444 = vmatmul.f32.gmra.mxu0 %v1064
          %v1445 = vpop.f32.mrf.mxu0
          %v1446 = vadd.f32 0.0, %v1445
          %1447 = vmatmul.f32.gmra.mxu0 %v1067
          %v1448 = vpop.f32.mrf.mxu0
          %v1449 = vadd.f32 0.0, %v1448
          %1450 = vmatmul.f32.gmra.mxu0 %v1070
          %v1451 = vpop.f32.mrf.mxu0
          %v1452 = vadd.f32 0.0, %v1451
          %1453 = vdwg.mxu0
          %1454 = vmatpush.msra.mxu0 %v1136
          %1455 = vmatpush.msra.mxu0 %v1134
          %1456 = vmatpush.msra.mxu0 %v1132
          %1457 = vmatpush.msra.mxu0 %v1130
          %1458 = vmatpush.msra.mxu0 %v1128
          %1459 = vmatpush.msra.mxu0 %v1126
          %1460 = vmatpush.msra.mxu0 %v1124
          %1461 = vmatpush.msra.mxu0 %v1122
          %1462 = vmatpush.msra.mxu0 %v1120
          %1463 = vmatpush.msra.mxu0 %v1118
          %1464 = vmatpush.msra.mxu0 %v1116
          %1465 = vmatpush.msra.mxu0 %v1114
          %1466 = vmatpush.msra.mxu0 %v1112
          %1467 = vmatpush.msra.mxu0 %v1110
          %1468 = vmatpush.msra.mxu0 %v1108
          %1469 = vmatpush.msra.mxu0 %v1106
          %1470 = vmatmul.f32.gmra.mxu0 %v1026
          %v1471 = vpop.f32.mrf.mxu0
          %v1472 = vadd.f32 %v1407, %v1471
          %1473 = vmatmul.f32.gmra.mxu0 %v1029
          %v1474 = vpop.f32.mrf.mxu0
          %v1475 = vadd.f32 %v1410, %v1474
          %1476 = vmatmul.f32.gmra.mxu0 %v1032
          %v1477 = vpop.f32.mrf.mxu0
          %v1478 = vadd.f32 %v1413, %v1477
          %1479 = vmatmul.f32.gmra.mxu0 %v1035
          %v1480 = vpop.f32.mrf.mxu0
          %v1481 = vadd.f32 %v1416, %v1480
          %1482 = vmatmul.f32.gmra.mxu0 %v1038
          %v1483 = vpop.f32.mrf.mxu0
          %v1484 = vadd.f32 %v1419, %v1483
          %1485 = vmatmul.f32.gmra.mxu0 %v1041
          %v1486 = vpop.f32.mrf.mxu0
          %v1487 = vadd.f32 %v1422, %v1486
          %1488 = vmatmul.f32.gmra.mxu0 %v1044
          %v1489 = vpop.f32.mrf.mxu0
          %v1490 = vadd.f32 %v1425, %v1489
          %1491 = vmatmul.f32.gmra.mxu0 %v1047
          %v1492 = vpop.f32.mrf.mxu0
          %v1493 = vadd.f32 %v1428, %v1492
          %1494 = vmatmul.f32.gmra.mxu0 %v1050
          %v1495 = vpop.f32.mrf.mxu0
          %v1496 = vadd.f32 %v1431, %v1495
          %1497 = vmatmul.f32.gmra.mxu0 %v1053
          %v1498 = vpop.f32.mrf.mxu0
          %v1499 = vadd.f32 %v1434, %v1498
          %1500 = vmatmul.f32.gmra.mxu0 %v1056
          %v1501 = vpop.f32.mrf.mxu0
          %v1502 = vadd.f32 %v1437, %v1501
          %1503 = vmatmul.f32.gmra.mxu0 %v1059
          %v1504 = vpop.f32.mrf.mxu0
          %v1505 = vadd.f32 %v1440, %v1504
          %1506 = vmatmul.f32.gmra.mxu0 %v1062
          %v1507 = vpop.f32.mrf.mxu0
          %v1508 = vadd.f32 %v1443, %v1507
          %1509 = vmatmul.f32.gmra.mxu0 %v1065
          %v1510 = vpop.f32.mrf.mxu0
          %v1511 = vadd.f32 %v1446, %v1510
          %1512 = vmatmul.f32.gmra.mxu0 %v1068
          %v1513 = vpop.f32.mrf.mxu0
          %v1514 = vadd.f32 %v1449, %v1513
          %1515 = vmatmul.f32.gmra.mxu0 %v1071
          %v1516 = vpop.f32.mrf.mxu0
          %v1517 = vadd.f32 %v1452, %v1516
          %1518 = vdwg.mxu0
          %1519 = vmatpush.msra.mxu0 0.0
          %1520 = vmatpush.msra.mxu0 0.0
          %1521 = vmatpush.msra.mxu0 0.0
          %1522 = vmatpush.msra.mxu0 0.0
          %1523 = vmatpush.msra.mxu0 0.0
          %1524 = vmatpush.msra.mxu0 0.0
          %1525 = vmatpush.msra.mxu0 0.0
          %1526 = vmatpush.msra.mxu0 0.0
          %1527 = vmatpush.msra.mxu0 0.0
          %1528 = vmatpush.msra.mxu0 0.0
          %1529 = vmatpush.msra.mxu0 0.0
          %1530 = vmatpush.msra.mxu0 0.0
          %1531 = vmatpush.msra.mxu0 %v1144
          %1532 = vmatpush.msra.mxu0 %v1142
          %1533 = vmatpush.msra.mxu0 %v1140
          %1534 = vmatpush.msra.mxu0 %v1138
          %1535 = vmatmul.f32.gmra.mxu0 %v1147
          %v1536 = vpop.f32.mrf.mxu0
          %v1537 = vadd.f32 %v1472, %v1536
          %1538 = vmatmul.f32.gmra.mxu0 %v1150
          %v1539 = vpop.f32.mrf.mxu0
          %v1540 = vadd.f32 %v1475, %v1539
          %1541 = vmatmul.f32.gmra.mxu0 %v1153
          %v1542 = vpop.f32.mrf.mxu0
          %v1543 = vadd.f32 %v1478, %v1542
          %1544 = vmatmul.f32.gmra.mxu0 %v1156
          %v1545 = vpop.f32.mrf.mxu0
          %v1546 = vadd.f32 %v1481, %v1545
          %1547 = vmatmul.f32.gmra.mxu0 %v1159
          %v1548 = vpop.f32.mrf.mxu0
          %v1549 = vadd.f32 %v1484, %v1548
          %1550 = vmatmul.f32.gmra.mxu0 %v1162
          %v1551 = vpop.f32.mrf.mxu0
          %v1552 = vadd.f32 %v1487, %v1551
          %1553 = vmatmul.f32.gmra.mxu0 %v1165
          %v1554 = vpop.f32.mrf.mxu0
          %v1555 = vadd.f32 %v1490, %v1554
          %1556 = vmatmul.f32.gmra.mxu0 %v1168
          %v1557 = vpop.f32.mrf.mxu0
          %v1558 = vadd.f32 %v1493, %v1557
          %1559 = vmatmul.f32.gmra.mxu0 %v1171
          %v1560 = vpop.f32.mrf.mxu0
          %v1561 = vadd.f32 %v1496, %v1560
          %1562 = vmatmul.f32.gmra.mxu0 %v1174
          %v1563 = vpop.f32.mrf.mxu0
          %v1564 = vadd.f32 %v1499, %v1563
          %1565 = vmatmul.f32.gmra.mxu0 %v1177
          %v1566 = vpop.f32.mrf.mxu0
          %v1567 = vadd.f32 %v1502, %v1566
          %1568 = vmatmul.f32.gmra.mxu0 %v1180
          %v1569 = vpop.f32.mrf.mxu0
          %v1570 = vadd.f32 %v1505, %v1569
          %1571 = vmatmul.f32.gmra.mxu0 %v1183
          %v1572 = vpop.f32.mrf.mxu0
          %v1573 = vadd.f32 %v1508, %v1572
          %1574 = vmatmul.f32.gmra.mxu0 %v1186
          %v1575 = vpop.f32.mrf.mxu0
          %v1576 = vadd.f32 %v1511, %v1575
          %1577 = vmatmul.f32.gmra.mxu0 %v1189
          %v1578 = vpop.f32.mrf.mxu0
          %v1579 = vadd.f32 %v1514, %v1578
          %1580 = vmatmul.f32.gmra.mxu0 %v1192
          %v1581 = vpop.f32.mrf.mxu0
          %v1582 = vadd.f32 %v1517, %v1581
          %1583 = vdwg.mxu0
          %1584 = vst [vmem:[#allocation5] sm:$0xff] %v1342
          %1585 = vst [vmem:[#allocation5 + $0x8] sm:$0xff] %v1537
          %1586 = vst [vmem:[#allocation5 + $0x10] sm:$0xff] %v1345
          %1587 = vst [vmem:[#allocation5 + $0x18] sm:$0xff] %v1540
          %1588 = vst [vmem:[#allocation5 + $0x20] sm:$0xff] %v1348
          %1589 = vst [vmem:[#allocation5 + $0x28] sm:$0xff] %v1543
          %1590 = vst [vmem:[#allocation5 + $0x30] sm:$0xff] %v1351
          %1591 = vst [vmem:[#allocation5 + $0x38] sm:$0xff] %v1546
          %1592 = vst [vmem:[#allocation5 + $0x40] sm:$0xff] %v1354
          %1593 = vst [vmem:[#allocation5 + $0x48] sm:$0xff] %v1549
          %1594 = vst [vmem:[#allocation5 + $0x50] sm:$0xff] %v1357
          %1595 = vst [vmem:[#allocation5 + $0x58] sm:$0xff] %v1552
          %1596 = vst [vmem:[#allocation5 + $0x60] sm:$0xff] %v1360
          %1597 = vst [vmem:[#allocation5 + $0x68] sm:$0xff] %v1555
          %1598 = vst [vmem:[#allocation5 + $0x70] sm:$0xff] %v1363
          %1599 = vst [vmem:[#allocation5 + $0x78] sm:$0xff] %v1558
          %1600 = vst [vmem:[#allocation5 + $0x80] sm:$0xff] %v1366
          %1601 = vst [vmem:[#allocation5 + $0x88] sm:$0xff] %v1561
          %1602 = vst [vmem:[#allocation5 + $0x90] sm:$0xff] %v1369
          %1603 = vst [vmem:[#allocation5 + $0x98] sm:$0xff] %v1564
          %1604 = vst [vmem:[#allocation5 + $0xa0] sm:$0xff] %v1372
          %1605 = vst [vmem:[#allocation5 + $0xa8] sm:$0xff] %v1567
          %1606 = vst [vmem:[#allocation5 + $0xb0] sm:$0xff] %v1375
          %1607 = vst [vmem:[#allocation5 + $0xb8] sm:$0xff] %v1570
          %1608 = vst [vmem:[#allocation5 + $0xc0] sm:$0xff] %v1378
          %1609 = vst [vmem:[#allocation5 + $0xc8] sm:$0xff] %v1573
          %1610 = vst [vmem:[#allocation5 + $0xd0] sm:$0xff] %v1381
          %1611 = vst [vmem:[#allocation5 + $0xd8] sm:$0xff] %v1576
          %1612 = vst [vmem:[#allocation5 + $0xe0] sm:$0xff] %v1384
          %1613 = vst [vmem:[#allocation5 + $0xe8] sm:$0xff] %v1579
          %1614 = vst [vmem:[#allocation5 + $0xf0] sm:$0xff] %v1387
          %1615 = vst [vmem:[#allocation5 + $0xf8] sm:$0xff] %v1582
          %v1616 = vld [vmem:[#allocation3] sm:$0xff]
          %v1617 = vld [vmem:[#allocation3 + $0x8] sm:$0xff]
          %v1618 = vld [vmem:[#allocation3 + $0x10] sm:$0xff]
          %v1619 = vld [vmem:[#allocation3 + $0x18] sm:$0xff]
          %v1620 = vld [vmem:[#allocation3 + $0x20] sm:$0xff]
          %v1621 = vld [vmem:[#allocation3 + $0x28] sm:$0xff]
          %v1622 = vld [vmem:[#allocation3 + $0x30] sm:$0xff]
          %v1623 = vld [vmem:[#allocation3 + $0x38] sm:$0xff]
          %v1624 = vld [vmem:[#allocation5] sm:$0xff]
          %v1625 = vld [vmem:[#allocation5 + $0x8] sm:$0xff]
          %v1626 = vld [vmem:[#allocation5 + $0x10] sm:$0xff]
          %v1627 = vld [vmem:[#allocation5 + $0x18] sm:$0xff]
          %v1628 = vld [vmem:[#allocation5 + $0x20] sm:$0xff]
          %v1629 = vld [vmem:[#allocation5 + $0x28] sm:$0xff]
          %v1630 = vld [vmem:[#allocation5 + $0x30] sm:$0xff]
          %v1631 = vld [vmem:[#allocation5 + $0x38] sm:$0xff]
          %s1632 = smul.u32 %s418, 32
          %s1633 = smul.addr %s1632, 8
          %s1634 = scalar_lea.vmem %s305, %s1633 [#allocation6]
          %v1635 = vld [vmem:[%s1634] sm:$0xff]
          %v1636 = vld [vmem:[%s1634 + $0x8] sm:$0xff]
          %v1637 = vld [vmem:[%s1634 + $0x10] sm:$0xff]
          %v1638 = vld [vmem:[%s1634 + $0x18] sm:$0xff]
          %v1639 = vld [vmem:[%s1634 + $0x20] sm:$0xff]
          %v1640 = vld [vmem:[%s1634 + $0x28] sm:$0xff]
          %v1641 = vld [vmem:[%s1634 + $0x30] sm:$0xff]
          %v1642 = vld [vmem:[%s1634 + $0x38] sm:$0xff]
          %v1643 = vadd.f32 %v1624, %v1635
          %v1644 = vadd.f32 %v1625, %v1636
          %v1645 = vadd.f32 %v1626, %v1637
          %v1646 = vadd.f32 %v1627, %v1638
          %v1647 = vadd.f32 %v1628, %v1639
          %v1648 = vadd.f32 %v1629, %v1640
          %v1649 = vadd.f32 %v1630, %v1641
          %v1650 = vadd.f32 %v1631, %v1642
          %v1651 = vld [vmem:[#allocation5 + $0x40] sm:$0xff]
          %v1652 = vld [vmem:[#allocation5 + $0x48] sm:$0xff]
          %v1653 = vld [vmem:[#allocation5 + $0x50] sm:$0xff]
          %v1654 = vld [vmem:[#allocation5 + $0x58] sm:$0xff]
          %v1655 = vld [vmem:[#allocation5 + $0x60] sm:$0xff]
          %v1656 = vld [vmem:[#allocation5 + $0x68] sm:$0xff]
          %v1657 = vld [vmem:[#allocation5 + $0x70] sm:$0xff]
          %v1658 = vld [vmem:[#allocation5 + $0x78] sm:$0xff]
          %v1659 = vld [vmem:[%s1634 + $0x40] sm:$0xff]
          %v1660 = vld [vmem:[%s1634 + $0x48] sm:$0xff]
          %v1661 = vld [vmem:[%s1634 + $0x50] sm:$0xff]
          %v1662 = vld [vmem:[%s1634 + $0x58] sm:$0xff]
          %v1663 = vld [vmem:[%s1634 + $0x60] sm:$0xff]
          %v1664 = vld [vmem:[%s1634 + $0x68] sm:$0xff]
          %v1665 = vld [vmem:[%s1634 + $0x70] sm:$0xff]
          %v1666 = vld [vmem:[%s1634 + $0x78] sm:$0xff]
          %v1667 = vadd.f32 %v1651, %v1659
          %v1668 = vadd.f32 %v1652, %v1660
          %v1669 = vadd.f32 %v1653, %v1661
          %v1670 = vadd.f32 %v1654, %v1662
          %v1671 = vadd.f32 %v1655, %v1663
          %v1672 = vadd.f32 %v1656, %v1664
          %v1673 = vadd.f32 %v1657, %v1665
          %v1674 = vadd.f32 %v1658, %v1666
          %v1675 = vld [vmem:[#allocation5 + $0x80] sm:$0xff]
          %v1676 = vld [vmem:[#allocation5 + $0x88] sm:$0xff]
          %v1677 = vld [vmem:[#allocation5 + $0x90] sm:$0xff]
          %v1678 = vld [vmem:[#allocation5 + $0x98] sm:$0xff]
          %v1679 = vld [vmem:[#allocation5 + $0xa0] sm:$0xff]
          %v1680 = vld [vmem:[#allocation5 + $0xa8] sm:$0xff]
          %v1681 = vld [vmem:[#allocation5 + $0xb0] sm:$0xff]
          %v1682 = vld [vmem:[#allocation5 + $0xb8] sm:$0xff]
          %v1683 = vld [vmem:[%s1634 + $0x80] sm:$0xff]
          %v1684 = vld [vmem:[%s1634 + $0x88] sm:$0xff]
          %v1685 = vld [vmem:[%s1634 + $0x90] sm:$0xff]
          %v1686 = vld [vmem:[%s1634 + $0x98] sm:$0xff]
          %v1687 = vld [vmem:[%s1634 + $0xa0] sm:$0xff]
          %v1688 = vld [vmem:[%s1634 + $0xa8] sm:$0xff]
          %v1689 = vld [vmem:[%s1634 + $0xb0] sm:$0xff]
          %v1690 = vld [vmem:[%s1634 + $0xb8] sm:$0xff]
          %v1691 = vadd.f32 %v1675, %v1683
          %v1692 = vadd.f32 %v1676, %v1684
          %v1693 = vadd.f32 %v1677, %v1685
          %v1694 = vadd.f32 %v1678, %v1686
          %v1695 = vadd.f32 %v1679, %v1687
          %v1696 = vadd.f32 %v1680, %v1688
          %v1697 = vadd.f32 %v1681, %v1689
          %v1698 = vadd.f32 %v1682, %v1690
          %v1699 = vld [vmem:[#allocation5 + $0xc0] sm:$0xff]
          %v1700 = vld [vmem:[#allocation5 + $0xc8] sm:$0xff]
          %v1701 = vld [vmem:[#allocation5 + $0xd0] sm:$0xff]
          %v1702 = vld [vmem:[#allocation5 + $0xd8] sm:$0xff]
          %v1703 = vld [vmem:[#allocation5 + $0xe0] sm:$0xff]
          %v1704 = vld [vmem:[#allocation5 + $0xe8] sm:$0xff]
          %v1705 = vld [vmem:[#allocation5 + $0xf0] sm:$0xff]
          %v1706 = vld [vmem:[#allocation5 + $0xf8] sm:$0xff]
          %v1707 = vld [vmem:[%s1634 + $0xc0] sm:$0xff]
          %v1708 = vld [vmem:[%s1634 + $0xc8] sm:$0xff]
          %v1709 = vld [vmem:[%s1634 + $0xd0] sm:$0xff]
          %v1710 = vld [vmem:[%s1634 + $0xd8] sm:$0xff]
          %v1711 = vld [vmem:[%s1634 + $0xe0] sm:$0xff]
          %v1712 = vld [vmem:[%s1634 + $0xe8] sm:$0xff]
          %v1713 = vld [vmem:[%s1634 + $0xf0] sm:$0xff]
          %v1714 = vld [vmem:[%s1634 + $0xf8] sm:$0xff]
          %v1715 = vadd.f32 %v1699, %v1707
          %v1716 = vadd.f32 %v1700, %v1708
          %v1717 = vadd.f32 %v1701, %v1709
          %v1718 = vadd.f32 %v1702, %v1710
          %v1719 = vadd.f32 %v1703, %v1711
          %v1720 = vadd.f32 %v1704, %v1712
          %v1721 = vadd.f32 %v1705, %v1713
          %v1722 = vadd.f32 %v1706, %v1714
          %v1723 = vld [vmem:[#allocation9] sm:$0xff]
          %v1724 = vld [vmem:[#allocation9 + $0x8] sm:$0xff]
          %v1725 = vld [vmem:[#allocation9 + $0x10] sm:$0xff]
          %v1726 = vld [vmem:[#allocation9 + $0x18] sm:$0xff]
          %v1727 = vld [vmem:[#allocation9 + $0x20] sm:$0xff]
          %v1728 = vld [vmem:[#allocation9 + $0x28] sm:$0xff]
          %v1729 = vld [vmem:[#allocation9 + $0x30] sm:$0xff]
          %v1730 = vld [vmem:[#allocation9 + $0x38] sm:$0xff]
          %v1731 = vmul.f32 %v1723, %v1616
          %v1732 = vmul.f32 %v1724, %v1617
          %v1733 = vmul.f32 %v1725, %v1618
          %v1734 = vmul.f32 %v1726, %v1619
          %v1735 = vmul.f32 %v1727, %v1620
          %v1736 = vmul.f32 %v1728, %v1621
          %v1737 = vmul.f32 %v1729, %v1622
          %v1738 = vmul.f32 %v1730, %v1623
          %v1739 = vadd.f32 %v1643, %v1731
          %v1740 = vadd.f32 %v1644, %v1732
          %v1741 = vadd.f32 %v1645, %v1733
          %v1742 = vadd.f32 %v1646, %v1734
          %v1743 = vadd.f32 %v1647, %v1735
          %v1744 = vadd.f32 %v1648, %v1736
          %v1745 = vadd.f32 %v1649, %v1737
          %v1746 = vadd.f32 %v1650, %v1738
          %v1747 = vxor.u32 %v1739, 2147483648
          %v1748 = vxor.u32 %v1740, 2147483648
          %v1749 = vxor.u32 %v1741, 2147483648
          %v1750 = vxor.u32 %v1742, 2147483648
          %v1751 = vxor.u32 %v1743, 2147483648
          %v1752 = vxor.u32 %v1744, 2147483648
          %v1753 = vxor.u32 %v1745, 2147483648
          %v1754 = vxor.u32 %v1746, 2147483648
          %v1755 = vmul.f32 %v1747, 1.442695
          %v1756 = vpow.pop %v1755
          %v1757 = vmul.f32 %v1748, 1.442695
          %v1758 = vpow.pop %v1757
          %v1759 = vmul.f32 %v1749, 1.442695
          %v1760 = vpow.pop %v1759
          %v1761 = vmul.f32 %v1750, 1.442695
          %v1762 = vpow.pop %v1761
          %v1763 = vmul.f32 %v1751, 1.442695
          %v1764 = vpow.pop %v1763
          %v1765 = vmul.f32 %v1752, 1.442695
          %v1766 = vpow.pop %v1765
          %v1767 = vmul.f32 %v1753, 1.442695
          %v1768 = vpow.pop %v1767
          %v1769 = vmul.f32 %v1754, 1.442695
          %v1770 = vpow.pop %v1769
          %v1771 = vadd.f32 %v1756, 1.0
          %v1772 = vadd.f32 %v1758, 1.0
          %v1773 = vadd.f32 %v1760, 1.0
          %v1774 = vadd.f32 %v1762, 1.0
          %v1775 = vadd.f32 %v1764, 1.0
          %v1776 = vadd.f32 %v1766, 1.0
          %v1777 = vadd.f32 %v1768, 1.0
          %v1778 = vadd.f32 %v1770, 1.0
          %v1779 = vrcp.pop %v1771
          %v1780 = vmul.f32 %v1771, %v1779
          %v1781 = vsub.f32 1.0, %v1780
          %v1782 = vmul.f32 %v1779, %v1781
          %v1783 = vadd.f32 %v1779, %v1782
          %vm1784 = vweird.f32 %v1771
          %vm1785 = vweird.f32 %v1779
          %vm1786 = vmor %vm1784, %vm1785
          %v1787 = vsel %vm1786, %v1779, %v1783
          %v1788 = vand.u32 2147483647, %v1771
          %vm1789 = vcmp.eq.f32.partialorder %v1788, 8.507059e+37
          %v1790 = vand.u32 %v1771, 2147483648
          %v1791 = vor.u32 1.1754944e-38, %v1790
          %v1792 = vsel %vm1789, %v1791, %v1787
          %v1793 = vmul.f32 1.0, %v1792
          %v1794 = vrcp.pop %v1772
          %v1795 = vmul.f32 %v1772, %v1794
          %v1796 = vsub.f32 1.0, %v1795
          %v1797 = vmul.f32 %v1794, %v1796
          %v1798 = vadd.f32 %v1794, %v1797
          %vm1799 = vweird.f32 %v1772
          %vm1800 = vweird.f32 %v1794
          %vm1801 = vmor %vm1799, %vm1800
          %v1802 = vsel %vm1801, %v1794, %v1798
          %v1803 = vand.u32 2147483647, %v1772
          %vm1804 = vcmp.eq.f32.partialorder %v1803, 8.507059e+37
          %v1805 = vand.u32 %v1772, 2147483648
          %v1806 = vor.u32 1.1754944e-38, %v1805
          %v1807 = vsel %vm1804, %v1806, %v1802
          %v1808 = vmul.f32 1.0, %v1807
          %v1809 = vrcp.pop %v1773
          %v1810 = vmul.f32 %v1773, %v1809
          %v1811 = vsub.f32 1.0, %v1810
          %v1812 = vmul.f32 %v1809, %v1811
          %v1813 = vadd.f32 %v1809, %v1812
          %vm1814 = vweird.f32 %v1773
          %vm1815 = vweird.f32 %v1809
          %vm1816 = vmor %vm1814, %vm1815
          %v1817 = vsel %vm1816, %v1809, %v1813
          %v1818 = vand.u32 2147483647, %v1773
          %vm1819 = vcmp.eq.f32.partialorder %v1818, 8.507059e+37
          %v1820 = vand.u32 %v1773, 2147483648
          %v1821 = vor.u32 1.1754944e-38, %v1820
          %v1822 = vsel %vm1819, %v1821, %v1817
          %v1823 = vmul.f32 1.0, %v1822
          %v1824 = vrcp.pop %v1774
          %v1825 = vmul.f32 %v1774, %v1824
          %v1826 = vsub.f32 1.0, %v1825
          %v1827 = vmul.f32 %v1824, %v1826
          %v1828 = vadd.f32 %v1824, %v1827
          %vm1829 = vweird.f32 %v1774
          %vm1830 = vweird.f32 %v1824
          %vm1831 = vmor %vm1829, %vm1830
          %v1832 = vsel %vm1831, %v1824, %v1828
          %v1833 = vand.u32 2147483647, %v1774
          %vm1834 = vcmp.eq.f32.partialorder %v1833, 8.507059e+37
          %v1835 = vand.u32 %v1774, 2147483648
          %v1836 = vor.u32 1.1754944e-38, %v1835
          %v1837 = vsel %vm1834, %v1836, %v1832
          %v1838 = vmul.f32 1.0, %v1837
          %v1839 = vrcp.pop %v1775
          %v1840 = vmul.f32 %v1775, %v1839
          %v1841 = vsub.f32 1.0, %v1840
          %v1842 = vmul.f32 %v1839, %v1841
          %v1843 = vadd.f32 %v1839, %v1842
          %vm1844 = vweird.f32 %v1775
          %vm1845 = vweird.f32 %v1839
          %vm1846 = vmor %vm1844, %vm1845
          %v1847 = vsel %vm1846, %v1839, %v1843
          %v1848 = vand.u32 2147483647, %v1775
          %vm1849 = vcmp.eq.f32.partialorder %v1848, 8.507059e+37
          %v1850 = vand.u32 %v1775, 2147483648
          %v1851 = vor.u32 1.1754944e-38, %v1850
          %v1852 = vsel %vm1849, %v1851, %v1847
          %v1853 = vmul.f32 1.0, %v1852
          %v1854 = vrcp.pop %v1776
          %v1855 = vmul.f32 %v1776, %v1854
          %v1856 = vsub.f32 1.0, %v1855
          %v1857 = vmul.f32 %v1854, %v1856
          %v1858 = vadd.f32 %v1854, %v1857
          %vm1859 = vweird.f32 %v1776
          %vm1860 = vweird.f32 %v1854
          %vm1861 = vmor %vm1859, %vm1860
          %v1862 = vsel %vm1861, %v1854, %v1858
          %v1863 = vand.u32 2147483647, %v1776
          %vm1864 = vcmp.eq.f32.partialorder %v1863, 8.507059e+37
          %v1865 = vand.u32 %v1776, 2147483648
          %v1866 = vor.u32 1.1754944e-38, %v1865
          %v1867 = vsel %vm1864, %v1866, %v1862
          %v1868 = vmul.f32 1.0, %v1867
          %v1869 = vrcp.pop %v1777
          %v1870 = vmul.f32 %v1777, %v1869
          %v1871 = vsub.f32 1.0, %v1870
          %v1872 = vmul.f32 %v1869, %v1871
          %v1873 = vadd.f32 %v1869, %v1872
          %vm1874 = vweird.f32 %v1777
          %vm1875 = vweird.f32 %v1869
          %vm1876 = vmor %vm1874, %vm1875
          %v1877 = vsel %vm1876, %v1869, %v1873
          %v1878 = vand.u32 2147483647, %v1777
          %vm1879 = vcmp.eq.f32.partialorder %v1878, 8.507059e+37
          %v1880 = vand.u32 %v1777, 2147483648
          %v1881 = vor.u32 1.1754944e-38, %v1880
          %v1882 = vsel %vm1879, %v1881, %v1877
          %v1883 = vmul.f32 1.0, %v1882
          %v1884 = vrcp.pop %v1778
          %v1885 = vmul.f32 %v1778, %v1884
          %v1886 = vsub.f32 1.0, %v1885
          %v1887 = vmul.f32 %v1884, %v1886
          %v1888 = vadd.f32 %v1884, %v1887
          %vm1889 = vweird.f32 %v1778
          %vm1890 = vweird.f32 %v1884
          %vm1891 = vmor %vm1889, %vm1890
          %v1892 = vsel %vm1891, %v1884, %v1888
          %v1893 = vand.u32 2147483647, %v1778
          %vm1894 = vcmp.eq.f32.partialorder %v1893, 8.507059e+37
          %v1895 = vand.u32 %v1778, 2147483648
          %v1896 = vor.u32 1.1754944e-38, %v1895
          %v1897 = vsel %vm1894, %v1896, %v1892
          %v1898 = vmul.f32 1.0, %v1897
          %v1899 = vld [vmem:[#allocation11] sm:$0xff]
          %v1900 = vld [vmem:[#allocation11 + $0x8] sm:$0xff]
          %v1901 = vld [vmem:[#allocation11 + $0x10] sm:$0xff]
          %v1902 = vld [vmem:[#allocation11 + $0x18] sm:$0xff]
          %v1903 = vld [vmem:[#allocation11 + $0x20] sm:$0xff]
          %v1904 = vld [vmem:[#allocation11 + $0x28] sm:$0xff]
          %v1905 = vld [vmem:[#allocation11 + $0x30] sm:$0xff]
          %v1906 = vld [vmem:[#allocation11 + $0x38] sm:$0xff]
          %v1907 = vmul.f32 %v1899, %v1616
          %v1908 = vmul.f32 %v1900, %v1617
          %v1909 = vmul.f32 %v1901, %v1618
          %v1910 = vmul.f32 %v1902, %v1619
          %v1911 = vmul.f32 %v1903, %v1620
          %v1912 = vmul.f32 %v1904, %v1621
          %v1913 = vmul.f32 %v1905, %v1622
          %v1914 = vmul.f32 %v1906, %v1623
          %v1915 = vadd.f32 %v1667, %v1907
          %v1916 = vadd.f32 %v1668, %v1908
          %v1917 = vadd.f32 %v1669, %v1909
          %v1918 = vadd.f32 %v1670, %v1910
          %v1919 = vadd.f32 %v1671, %v1911
          %v1920 = vadd.f32 %v1672, %v1912
          %v1921 = vadd.f32 %v1673, %v1913
          %v1922 = vadd.f32 %v1674, %v1914
          %v1923 = vxor.u32 %v1915, 2147483648
          %v1924 = vxor.u32 %v1916, 2147483648
          %v1925 = vxor.u32 %v1917, 2147483648
          %v1926 = vxor.u32 %v1918, 2147483648
          %v1927 = vxor.u32 %v1919, 2147483648
          %v1928 = vxor.u32 %v1920, 2147483648
          %v1929 = vxor.u32 %v1921, 2147483648
          %v1930 = vxor.u32 %v1922, 2147483648
          %v1931 = vmul.f32 %v1923, 1.442695
          %v1932 = vpow.pop %v1931
          %v1933 = vmul.f32 %v1924, 1.442695
          %v1934 = vpow.pop %v1933
          %v1935 = vmul.f32 %v1925, 1.442695
          %v1936 = vpow.pop %v1935
          %v1937 = vmul.f32 %v1926, 1.442695
          %v1938 = vpow.pop %v1937
          %v1939 = vmul.f32 %v1927, 1.442695
          %v1940 = vpow.pop %v1939
          %v1941 = vmul.f32 %v1928, 1.442695
          %v1942 = vpow.pop %v1941
          %v1943 = vmul.f32 %v1929, 1.442695
          %v1944 = vpow.pop %v1943
          %v1945 = vmul.f32 %v1930, 1.442695
          %v1946 = vpow.pop %v1945
          %v1947 = vadd.f32 %v1932, 1.0
          %v1948 = vadd.f32 %v1934, 1.0
          %v1949 = vadd.f32 %v1936, 1.0
          %v1950 = vadd.f32 %v1938, 1.0
          %v1951 = vadd.f32 %v1940, 1.0
          %v1952 = vadd.f32 %v1942, 1.0
          %v1953 = vadd.f32 %v1944, 1.0
          %v1954 = vadd.f32 %v1946, 1.0
          %v1955 = vrcp.pop %v1947
          %v1956 = vmul.f32 %v1947, %v1955
          %v1957 = vsub.f32 1.0, %v1956
          %v1958 = vmul.f32 %v1955, %v1957
          %v1959 = vadd.f32 %v1955, %v1958
          %vm1960 = vweird.f32 %v1947
          %vm1961 = vweird.f32 %v1955
          %vm1962 = vmor %vm1960, %vm1961
          %v1963 = vsel %vm1962, %v1955, %v1959
          %v1964 = vand.u32 2147483647, %v1947
          %vm1965 = vcmp.eq.f32.partialorder %v1964, 8.507059e+37
          %v1966 = vand.u32 %v1947, 2147483648
          %v1967 = vor.u32 1.1754944e-38, %v1966
          %v1968 = vsel %vm1965, %v1967, %v1963
          %v1969 = vmul.f32 1.0, %v1968
          %v1970 = vrcp.pop %v1948
          %v1971 = vmul.f32 %v1948, %v1970
          %v1972 = vsub.f32 1.0, %v1971
          %v1973 = vmul.f32 %v1970, %v1972
          %v1974 = vadd.f32 %v1970, %v1973
          %vm1975 = vweird.f32 %v1948
          %vm1976 = vweird.f32 %v1970
          %vm1977 = vmor %vm1975, %vm1976
          %v1978 = vsel %vm1977, %v1970, %v1974
          %v1979 = vand.u32 2147483647, %v1948
          %vm1980 = vcmp.eq.f32.partialorder %v1979, 8.507059e+37
          %v1981 = vand.u32 %v1948, 2147483648
          %v1982 = vor.u32 1.1754944e-38, %v1981
          %v1983 = vsel %vm1980, %v1982, %v1978
          %v1984 = vmul.f32 1.0, %v1983
          %v1985 = vrcp.pop %v1949
          %v1986 = vmul.f32 %v1949, %v1985
          %v1987 = vsub.f32 1.0, %v1986
          %v1988 = vmul.f32 %v1985, %v1987
          %v1989 = vadd.f32 %v1985, %v1988
          %vm1990 = vweird.f32 %v1949
          %vm1991 = vweird.f32 %v1985
          %vm1992 = vmor %vm1990, %vm1991
          %v1993 = vsel %vm1992, %v1985, %v1989
          %v1994 = vand.u32 2147483647, %v1949
          %vm1995 = vcmp.eq.f32.partialorder %v1994, 8.507059e+37
          %v1996 = vand.u32 %v1949, 2147483648
          %v1997 = vor.u32 1.1754944e-38, %v1996
          %v1998 = vsel %vm1995, %v1997, %v1993
          %v1999 = vmul.f32 1.0, %v1998
          %v2000 = vrcp.pop %v1950
          %v2001 = vmul.f32 %v1950, %v2000
          %v2002 = vsub.f32 1.0, %v2001
          %v2003 = vmul.f32 %v2000, %v2002
          %v2004 = vadd.f32 %v2000, %v2003
          %vm2005 = vweird.f32 %v1950
          %vm2006 = vweird.f32 %v2000
          %vm2007 = vmor %vm2005, %vm2006
          %v2008 = vsel %vm2007, %v2000, %v2004
          %v2009 = vand.u32 2147483647, %v1950
          %vm2010 = vcmp.eq.f32.partialorder %v2009, 8.507059e+37
          %v2011 = vand.u32 %v1950, 2147483648
          %v2012 = vor.u32 1.1754944e-38, %v2011
          %v2013 = vsel %vm2010, %v2012, %v2008
          %v2014 = vmul.f32 1.0, %v2013
          %v2015 = vrcp.pop %v1951
          %v2016 = vmul.f32 %v1951, %v2015
          %v2017 = vsub.f32 1.0, %v2016
          %v2018 = vmul.f32 %v2015, %v2017
          %v2019 = vadd.f32 %v2015, %v2018
          %vm2020 = vweird.f32 %v1951
          %vm2021 = vweird.f32 %v2015
          %vm2022 = vmor %vm2020, %vm2021
          %v2023 = vsel %vm2022, %v2015, %v2019
          %v2024 = vand.u32 2147483647, %v1951
          %vm2025 = vcmp.eq.f32.partialorder %v2024, 8.507059e+37
          %v2026 = vand.u32 %v1951, 2147483648
          %v2027 = vor.u32 1.1754944e-38, %v2026
          %v2028 = vsel %vm2025, %v2027, %v2023
          %v2029 = vmul.f32 1.0, %v2028
          %v2030 = vrcp.pop %v1952
          %v2031 = vmul.f32 %v1952, %v2030
          %v2032 = vsub.f32 1.0, %v2031
          %v2033 = vmul.f32 %v2030, %v2032
          %v2034 = vadd.f32 %v2030, %v2033
          %vm2035 = vweird.f32 %v1952
          %vm2036 = vweird.f32 %v2030
          %vm2037 = vmor %vm2035, %vm2036
          %v2038 = vsel %vm2037, %v2030, %v2034
          %v2039 = vand.u32 2147483647, %v1952
          %vm2040 = vcmp.eq.f32.partialorder %v2039, 8.507059e+37
          %v2041 = vand.u32 %v1952, 2147483648
          %v2042 = vor.u32 1.1754944e-38, %v2041
          %v2043 = vsel %vm2040, %v2042, %v2038
          %v2044 = vmul.f32 1.0, %v2043
          %v2045 = vrcp.pop %v1953
          %v2046 = vmul.f32 %v1953, %v2045
          %v2047 = vsub.f32 1.0, %v2046
          %v2048 = vmul.f32 %v2045, %v2047
          %v2049 = vadd.f32 %v2045, %v2048
          %vm2050 = vweird.f32 %v1953
          %vm2051 = vweird.f32 %v2045
          %vm2052 = vmor %vm2050, %vm2051
          %v2053 = vsel %vm2052, %v2045, %v2049
          %v2054 = vand.u32 2147483647, %v1953
          %vm2055 = vcmp.eq.f32.partialorder %v2054, 8.507059e+37
          %v2056 = vand.u32 %v1953, 2147483648
          %v2057 = vor.u32 1.1754944e-38, %v2056
          %v2058 = vsel %vm2055, %v2057, %v2053
          %v2059 = vmul.f32 1.0, %v2058
          %v2060 = vrcp.pop %v1954
          %v2061 = vmul.f32 %v1954, %v2060
          %v2062 = vsub.f32 1.0, %v2061
          %v2063 = vmul.f32 %v2060, %v2062
          %v2064 = vadd.f32 %v2060, %v2063
          %vm2065 = vweird.f32 %v1954
          %vm2066 = vweird.f32 %v2060
          %vm2067 = vmor %vm2065, %vm2066
          %v2068 = vsel %vm2067, %v2060, %v2064
          %v2069 = vand.u32 2147483647, %v1954
          %vm2070 = vcmp.eq.f32.partialorder %v2069, 8.507059e+37
          %v2071 = vand.u32 %v1954, 2147483648
          %v2072 = vor.u32 1.1754944e-38, %v2071
          %v2073 = vsel %vm2070, %v2072, %v2068
          %v2074 = vmul.f32 1.0, %v2073
          %v2075 = vmul.f32 %v1969, %v1616
          %v2076 = vmul.f32 %v1984, %v1617
          %v2077 = vmul.f32 %v1999, %v1618
          %v2078 = vmul.f32 %v2014, %v1619
          %v2079 = vmul.f32 %v2029, %v1620
          %v2080 = vmul.f32 %v2044, %v1621
          %v2081 = vmul.f32 %v2059, %v1622
          %v2082 = vmul.f32 %v2074, %v1623
          %v2083 = vtanh.pop %v1691
          %v2084 = vtanh.pop %v1692
          %v2085 = vtanh.pop %v1693
          %v2086 = vtanh.pop %v1694
          %v2087 = vtanh.pop %v1695
          %v2088 = vtanh.pop %v1696
          %v2089 = vtanh.pop %v1697
          %v2090 = vtanh.pop %v1698
          %v2091 = vmul.f32 %v1793, %v2083
          %v2092 = vmul.f32 %v1808, %v2084
          %v2093 = vmul.f32 %v1823, %v2085
          %v2094 = vmul.f32 %v1838, %v2086
          %v2095 = vmul.f32 %v1853, %v2087
          %v2096 = vmul.f32 %v1868, %v2088
          %v2097 = vmul.f32 %v1883, %v2089
          %v2098 = vmul.f32 %v1898, %v2090
          %v2099 = vadd.f32 %v2075, %v2091
          %v2100 = vadd.f32 %v2076, %v2092
          %v2101 = vadd.f32 %v2077, %v2093
          %v2102 = vadd.f32 %v2078, %v2094
          %v2103 = vadd.f32 %v2079, %v2095
          %v2104 = vadd.f32 %v2080, %v2096
          %v2105 = vadd.f32 %v2081, %v2097
          %v2106 = vadd.f32 %v2082, %v2098
          %v2107 = vld [vmem:[#allocation12] sm:$0xff]
          %v2108 = vld [vmem:[#allocation12 + $0x8] sm:$0xff]
          %v2109 = vld [vmem:[#allocation12 + $0x10] sm:$0xff]
          %v2110 = vld [vmem:[#allocation12 + $0x18] sm:$0xff]
          %v2111 = vld [vmem:[#allocation12 + $0x20] sm:$0xff]
          %v2112 = vld [vmem:[#allocation12 + $0x28] sm:$0xff]
          %v2113 = vld [vmem:[#allocation12 + $0x30] sm:$0xff]
          %v2114 = vld [vmem:[#allocation12 + $0x38] sm:$0xff]
          %v2115 = vmul.f32 %v2107, %v2099
          %v2116 = vmul.f32 %v2108, %v2100
          %v2117 = vmul.f32 %v2109, %v2101
          %v2118 = vmul.f32 %v2110, %v2102
          %v2119 = vmul.f32 %v2111, %v2103
          %v2120 = vmul.f32 %v2112, %v2104
          %v2121 = vmul.f32 %v2113, %v2105
          %v2122 = vmul.f32 %v2114, %v2106
          %v2123 = vadd.f32 %v1715, %v2115
          %v2124 = vadd.f32 %v1716, %v2116
          %v2125 = vadd.f32 %v1717, %v2117
          %v2126 = vadd.f32 %v1718, %v2118
          %v2127 = vadd.f32 %v1719, %v2119
          %v2128 = vadd.f32 %v1720, %v2120
          %v2129 = vadd.f32 %v1721, %v2121
          %v2130 = vadd.f32 %v1722, %v2122
          %v2131 = vxor.u32 %v2123, 2147483648
          %v2132 = vxor.u32 %v2124, 2147483648
          %v2133 = vxor.u32 %v2125, 2147483648
          %v2134 = vxor.u32 %v2126, 2147483648
          %v2135 = vxor.u32 %v2127, 2147483648
          %v2136 = vxor.u32 %v2128, 2147483648
          %v2137 = vxor.u32 %v2129, 2147483648
          %v2138 = vxor.u32 %v2130, 2147483648
          %v2139 = vmul.f32 %v2131, 1.442695
          %v2140 = vpow.pop %v2139
          %v2141 = vmul.f32 %v2132, 1.442695
          %v2142 = vpow.pop %v2141
          %v2143 = vmul.f32 %v2133, 1.442695
          %v2144 = vpow.pop %v2143
          %v2145 = vmul.f32 %v2134, 1.442695
          %v2146 = vpow.pop %v2145
          %v2147 = vmul.f32 %v2135, 1.442695
          %v2148 = vpow.pop %v2147
          %v2149 = vmul.f32 %v2136, 1.442695
          %v2150 = vpow.pop %v2149
          %v2151 = vmul.f32 %v2137, 1.442695
          %v2152 = vpow.pop %v2151
          %v2153 = vmul.f32 %v2138, 1.442695
          %v2154 = vpow.pop %v2153
          %v2155 = vadd.f32 %v2140, 1.0
          %v2156 = vadd.f32 %v2142, 1.0
          %v2157 = vadd.f32 %v2144, 1.0
          %v2158 = vadd.f32 %v2146, 1.0
          %v2159 = vadd.f32 %v2148, 1.0
          %v2160 = vadd.f32 %v2150, 1.0
          %v2161 = vadd.f32 %v2152, 1.0
          %v2162 = vadd.f32 %v2154, 1.0
          %v2163 = vrcp.pop %v2155
          %v2164 = vmul.f32 %v2155, %v2163
          %v2165 = vsub.f32 1.0, %v2164
          %v2166 = vmul.f32 %v2163, %v2165
          %v2167 = vadd.f32 %v2163, %v2166
          %vm2168 = vweird.f32 %v2155
          %vm2169 = vweird.f32 %v2163
          %vm2170 = vmor %vm2168, %vm2169
          %v2171 = vsel %vm2170, %v2163, %v2167
          %v2172 = vand.u32 2147483647, %v2155
          %vm2173 = vcmp.eq.f32.partialorder %v2172, 8.507059e+37
          %v2174 = vand.u32 %v2155, 2147483648
          %v2175 = vor.u32 1.1754944e-38, %v2174
          %v2176 = vsel %vm2173, %v2175, %v2171
          %v2177 = vmul.f32 1.0, %v2176
          %v2178 = vrcp.pop %v2156
          %v2179 = vmul.f32 %v2156, %v2178
          %v2180 = vsub.f32 1.0, %v2179
          %v2181 = vmul.f32 %v2178, %v2180
          %v2182 = vadd.f32 %v2178, %v2181
          %vm2183 = vweird.f32 %v2156
          %vm2184 = vweird.f32 %v2178
          %vm2185 = vmor %vm2183, %vm2184
          %v2186 = vsel %vm2185, %v2178, %v2182
          %v2187 = vand.u32 2147483647, %v2156
          %vm2188 = vcmp.eq.f32.partialorder %v2187, 8.507059e+37
          %v2189 = vand.u32 %v2156, 2147483648
          %v2190 = vor.u32 1.1754944e-38, %v2189
          %v2191 = vsel %vm2188, %v2190, %v2186
          %v2192 = vmul.f32 1.0, %v2191
          %v2193 = vrcp.pop %v2157
          %v2194 = vmul.f32 %v2157, %v2193
          %v2195 = vsub.f32 1.0, %v2194
          %v2196 = vmul.f32 %v2193, %v2195
          %v2197 = vadd.f32 %v2193, %v2196
          %vm2198 = vweird.f32 %v2157
          %vm2199 = vweird.f32 %v2193
          %vm2200 = vmor %vm2198, %vm2199
          %v2201 = vsel %vm2200, %v2193, %v2197
          %v2202 = vand.u32 2147483647, %v2157
          %vm2203 = vcmp.eq.f32.partialorder %v2202, 8.507059e+37
          %v2204 = vand.u32 %v2157, 2147483648
          %v2205 = vor.u32 1.1754944e-38, %v2204
          %v2206 = vsel %vm2203, %v2205, %v2201
          %v2207 = vmul.f32 1.0, %v2206
          %v2208 = vrcp.pop %v2158
          %v2209 = vmul.f32 %v2158, %v2208
          %v2210 = vsub.f32 1.0, %v2209
          %v2211 = vmul.f32 %v2208, %v2210
          %v2212 = vadd.f32 %v2208, %v2211
          %vm2213 = vweird.f32 %v2158
          %vm2214 = vweird.f32 %v2208
          %vm2215 = vmor %vm2213, %vm2214
          %v2216 = vsel %vm2215, %v2208, %v2212
          %v2217 = vand.u32 2147483647, %v2158
          %vm2218 = vcmp.eq.f32.partialorder %v2217, 8.507059e+37
          %v2219 = vand.u32 %v2158, 2147483648
          %v2220 = vor.u32 1.1754944e-38, %v2219
          %v2221 = vsel %vm2218, %v2220, %v2216
          %v2222 = vmul.f32 1.0, %v2221
          %v2223 = vrcp.pop %v2159
          %v2224 = vmul.f32 %v2159, %v2223
          %v2225 = vsub.f32 1.0, %v2224
          %v2226 = vmul.f32 %v2223, %v2225
          %v2227 = vadd.f32 %v2223, %v2226
          %vm2228 = vweird.f32 %v2159
          %vm2229 = vweird.f32 %v2223
          %vm2230 = vmor %vm2228, %vm2229
          %v2231 = vsel %vm2230, %v2223, %v2227
          %v2232 = vand.u32 2147483647, %v2159
          %vm2233 = vcmp.eq.f32.partialorder %v2232, 8.507059e+37
          %v2234 = vand.u32 %v2159, 2147483648
          %v2235 = vor.u32 1.1754944e-38, %v2234
          %v2236 = vsel %vm2233, %v2235, %v2231
          %v2237 = vmul.f32 1.0, %v2236
          %v2238 = vrcp.pop %v2160
          %v2239 = vmul.f32 %v2160, %v2238
          %v2240 = vsub.f32 1.0, %v2239
          %v2241 = vmul.f32 %v2238, %v2240
          %v2242 = vadd.f32 %v2238, %v2241
          %vm2243 = vweird.f32 %v2160
          %vm2244 = vweird.f32 %v2238
          %vm2245 = vmor %vm2243, %vm2244
          %v2246 = vsel %vm2245, %v2238, %v2242
          %v2247 = vand.u32 2147483647, %v2160
          %vm2248 = vcmp.eq.f32.partialorder %v2247, 8.507059e+37
          %v2249 = vand.u32 %v2160, 2147483648
          %v2250 = vor.u32 1.1754944e-38, %v2249
          %v2251 = vsel %vm2248, %v2250, %v2246
          %v2252 = vmul.f32 1.0, %v2251
          %v2253 = vrcp.pop %v2161
          %v2254 = vmul.f32 %v2161, %v2253
          %v2255 = vsub.f32 1.0, %v2254
          %v2256 = vmul.f32 %v2253, %v2255
          %v2257 = vadd.f32 %v2253, %v2256
          %vm2258 = vweird.f32 %v2161
          %vm2259 = vweird.f32 %v2253
          %vm2260 = vmor %vm2258, %vm2259
          %v2261 = vsel %vm2260, %v2253, %v2257
          %v2262 = vand.u32 2147483647, %v2161
          %vm2263 = vcmp.eq.f32.partialorder %v2262, 8.507059e+37
          %v2264 = vand.u32 %v2161, 2147483648
          %v2265 = vor.u32 1.1754944e-38, %v2264
          %v2266 = vsel %vm2263, %v2265, %v2261
          %v2267 = vmul.f32 1.0, %v2266
          %v2268 = vrcp.pop %v2162
          %v2269 = vmul.f32 %v2162, %v2268
          %v2270 = vsub.f32 1.0, %v2269
          %v2271 = vmul.f32 %v2268, %v2270
          %v2272 = vadd.f32 %v2268, %v2271
          %vm2273 = vweird.f32 %v2162
          %vm2274 = vweird.f32 %v2268
          %vm2275 = vmor %vm2273, %vm2274
          %v2276 = vsel %vm2275, %v2268, %v2272
          %v2277 = vand.u32 2147483647, %v2162
          %vm2278 = vcmp.eq.f32.partialorder %v2277, 8.507059e+37
          %v2279 = vand.u32 %v2162, 2147483648
          %v2280 = vor.u32 1.1754944e-38, %v2279
          %v2281 = vsel %vm2278, %v2280, %v2276
          %v2282 = vmul.f32 1.0, %v2281
          %v2283 = vtanh.pop %v2099
          %v2284 = vtanh.pop %v2100
          %v2285 = vtanh.pop %v2101
          %v2286 = vtanh.pop %v2102
          %v2287 = vtanh.pop %v2103
          %v2288 = vtanh.pop %v2104
          %v2289 = vtanh.pop %v2105
          %v2290 = vtanh.pop %v2106
          %v2291 = vmul.f32 %v2177, %v2283
          %v2292 = vmul.f32 %v2192, %v2284
          %v2293 = vmul.f32 %v2207, %v2285
          %v2294 = vmul.f32 %v2222, %v2286
          %v2295 = vmul.f32 %v2237, %v2287
          %v2296 = vmul.f32 %v2252, %v2288
          %v2297 = vmul.f32 %v2267, %v2289
          %v2298 = vmul.f32 %v2282, %v2290
          %2299 = vst [vmem:[#allocation3] sm:$0xff] %v2099
          %2300 = vst [vmem:[#allocation3 + $0x8] sm:$0xff] %v2100
          %2301 = vst [vmem:[#allocation3 + $0x10] sm:$0xff] %v2101
          %2302 = vst [vmem:[#allocation3 + $0x18] sm:$0xff] %v2102
          %2303 = vst [vmem:[#allocation3 + $0x20] sm:$0xff] %v2103
          %2304 = vst [vmem:[#allocation3 + $0x28] sm:$0xff] %v2104
          %2305 = vst [vmem:[#allocation3 + $0x30] sm:$0xff] %v2105
          %2306 = vst [vmem:[#allocation3 + $0x38] sm:$0xff] %v2106
          %v2307 = vld [vmem:[#allocation14] ss:$4 sm:$0x3]
          %v2309 = vperm.slane %v2307, 0
          %v2310 = vperm.slane %v2307, 1
          %v2313 = vmul.f32 %v2291, %v2309
          %v2314 = vmul.f32 %v2292, %v2310
          %v2315 = vmul.f32 %v2293, %v2309
          %v2316 = vmul.f32 %v2294, %v2310
          %v2317 = vmul.f32 %v2295, %v2309
          %v2318 = vmul.f32 %v2296, %v2310
          %v2319 = vmul.f32 %v2297, %v2309
          %v2320 = vmul.f32 %v2298, %v2310
          %2321 = vst [vmem:[#allocation2 + $0x8] sm:$0xff] %v2313
          %2322 = vst [vmem:[#allocation2 + $0x10] sm:$0xff] %v2314
          %2323 = vst [vmem:[#allocation2 + $0x28] sm:$0xff] %v2315
          %2324 = vst [vmem:[#allocation2 + $0x30] sm:$0xff] %v2316
          %2325 = vst [vmem:[#allocation2 + $0x48] sm:$0xff] %v2317
          %2326 = vst [vmem:[#allocation2 + $0x50] sm:$0xff] %v2318
          %2327 = vst [vmem:[#allocation2 + $0x68] sm:$0xff] %v2319
          %2328 = vst [vmem:[#allocation2 + $0x70] sm:$0xff] %v2320
          %2329 = vst [vmem:[%s496 + $0x8] sm:$0xff] %v2291
          %2330 = vst [vmem:[%s496 + $0x10] sm:$0xff] %v2292
          %2331 = vst [vmem:[%s496 + $0x28] sm:$0xff] %v2293
          %2332 = vst [vmem:[%s496 + $0x30] sm:$0xff] %v2294
          %2333 = vst [vmem:[%s496 + $0x48] sm:$0xff] %v2295
          %2334 = vst [vmem:[%s496 + $0x50] sm:$0xff] %v2296
          %2335 = vst [vmem:[%s496 + $0x68] sm:$0xff] %v2297
          %2336 = vst [vmem:[%s496 + $0x70] sm:$0xff] %v2298
          %s2337 = scalar_lea.vmem [#allocation14], 2
          %v2338 = vld [vmem:[%s2337] ss:$4 sm:$0x3]
          %v2340 = vperm.slane %v2338, 0
          %v2341 = vperm.slane %v2338, 1
          %v2344 = vmul.f32 %v2291, %v2340
          %v2345 = vmul.f32 %v2292, %v2341
          %v2346 = vmul.f32 %v2293, %v2340
          %v2347 = vmul.f32 %v2294, %v2341
          %v2348 = vmul.f32 %v2295, %v2340
          %v2349 = vmul.f32 %v2296, %v2341
          %v2350 = vmul.f32 %v2297, %v2340
          %v2351 = vmul.f32 %v2298, %v2341
          %2352 = vst [vmem:[%s570 + $0x8] sm:$0xff] %v2344
          %2353 = vst [vmem:[%s570 + $0x10] sm:$0xff] %v2345
          %2354 = vst [vmem:[%s570 + $0x28] sm:$0xff] %v2346
          %2355 = vst [vmem:[%s570 + $0x30] sm:$0xff] %v2347
          %2356 = vst [vmem:[%s570 + $0x48] sm:$0xff] %v2348
          %2357 = vst [vmem:[%s570 + $0x50] sm:$0xff] %v2349
          %2358 = vst [vmem:[%s570 + $0x68] sm:$0xff] %v2350
          %2359 = vst [vmem:[%s570 + $0x70] sm:$0xff] %v2351
          %s2360 = smul.u32 %s418, 8
          %s2361 = smul.addr %s2360, 8
          %s2362 = scalar_lea.vmem %s354, %s2361 [#allocation15]
          %2363 = vst [vmem:[%s2362] sm:$0xff] %v2291
          %2364 = vst [vmem:[%s2362 + $0x8] sm:$0xff] %v2292
          %2365 = vst [vmem:[%s2362 + $0x10] sm:$0xff] %v2293
          %2366 = vst [vmem:[%s2362 + $0x18] sm:$0xff] %v2294
          %2367 = vst [vmem:[%s2362 + $0x20] sm:$0xff] %v2295
          %2368 = vst [vmem:[%s2362 + $0x28] sm:$0xff] %v2296
          %2369 = vst [vmem:[%s2362 + $0x30] sm:$0xff] %v2297
          %2370 = vst [vmem:[%s2362 + $0x38] sm:$0xff] %v2298
        $region73: #{tpu_custom_call.1} parent=43 // loop_footer
          %s422 = sadd.s32 1, %s418
        $region74: #{tpu_custom_call.1} parent=43 // loop_footer_branch
          %417 = sbr.rel target = $region70
        $region75: #{tpu_custom_call.1} parent=43 // loop_exit
          _
        %s2371 = sand.u32 %s180, 1
        %s2372 = scalar_lea.sflag [#allocation8], %s2371
        %s2373 = sand.u32 %s180, 1
        %s2374 = smul.addr %s2373, 512
        %s2375 = scalar_lea.vmem [#allocation15], %s2374
        // Predicated region
        $region76: #{tpu_custom_call.1} parent=43 // pred_check
          %p2376 = pneg %p190
        $region77: #{tpu_custom_call.1} parent=43 // pred_check_branch
          %2378 = sbr.rel (%p2376) target = $region79
        $region78: #{tpu_custom_call.1} parent=43 // pred_region
          %s2379 = smul.u32 8, %s30
          %2381 = vsyncadd %s2372, 0
          %s2382 = smul.addr %s2379, 8
          %s2383 = smul.addr %s29, 64
          %s2384 = sadd.s32 %s2382, %s2383
          %s2385 = smul.addr %s2384, 8
          %s2386 = scalar_lea.hbm %s6, %s2385
          %s2387 = sshll.u32 %s2375, 4
          %s2388 = int_to_ptr.vmem [resolvable:$true] %s2387
          %s2389 = sshll.u32 %s2386, 4
          %s2390 = int_to_ptr.hbm [resolvable:$true] %s2389
          %2395 = dma.vmem_to_hbm [thread:$0]  %s2388, 8192, %s2390, %s2372, 256, 256, 16
        $region79: #{tpu_custom_call.1} parent=43 // pred_fallthru
          _
      $region44: #{tpu_custom_call.1} parent=5 // pred_fallthru
        _
      %p2396 = scmp.le.s32.totalorder 2, %s20
      // Predicated region
      $region80: #{tpu_custom_call.1} parent=5 // pred_check
        %p2397 = pneg %p2396
      $region81: #{tpu_custom_call.1} parent=5 // pred_check_branch
        %2399 = sbr.rel (%p2397) target = $region83
      $region82: #{tpu_custom_call.1} parent=5 // pred_region
        %s2400 = ssub.s32 %s20, 2
        // Predicated region
        $region84: #{tpu_custom_call.1} parent=82 // pred_check
          %p2401 = pneg %p196
        $region85: #{tpu_custom_call.1} parent=82 // pred_check_branch
          %2403 = sbr.rel (%p2401) target = $region87
        $region86: #{tpu_custom_call.1} parent=82 // pred_region
          %s2404 = sand.u32 %s181, 1
          %s2405 = scalar_lea.sflag [#allocation8], %s2404
          %s2406 = sand.u32 %s181, 1
          %s2407 = smul.addr %s2406, 512
          %s2408 = scalar_lea.vmem [#allocation15], %s2407
          %2410 = dma.done %s2405, 8192
        $region87: #{tpu_custom_call.1} parent=82 // pred_fallthru
          _
      $region83: #{tpu_custom_call.1} parent=5 // pred_fallthru
        _
    $region6: #{tpu_custom_call.1} parent=1 // loop_footer
      %s24 = sadd.s32 1, %s20
    $region7: #{tpu_custom_call.1} parent=1 // loop_footer_branch
      %19 = sbr.rel target = $region3
    $region8: #{tpu_custom_call.1} parent=1 // loop_exit
      _
    %2411 = vsyncpa [#allocation7], 1
    %s2412 = scalar_lea.sflag [#allocation7], 1
    %2413 = vsyncpa %s2412, 1
    %2414 = vsyncpa [#allocation10], 1
    %2415 = vsyncpa [#allocation13], 1
    %2416 = vsyncpa [#allocation8], 1
    %s2417 = scalar_lea.sflag [#allocation8], 1
    %2418 = vsyncpa %s2417, 1

</llo_original>
